<compile_context>
chip_gen: v7x
topology: tpu7x:2x2x1
jax: 0.10.0
libtpu: 0.0.40
codegen_flags: <defaults>
</compile_context>

<pallas_src>
import functools

import jax
import jax.numpy as jnp
from jax import lax
from jax.experimental import pallas as pl
from jax.experimental.pallas import tpu as pltpu

N_CLASSES = 10
PRIOR = 1.0
KSIZE = 3


def _xedl_kernel(H, W, xp_ref, w1_ref, b1_ref, mask_ref, w2_ref, b2_ref, out_ref):
    """One image per grid step: conv(3x3,same) -> ReLU -> GAP -> Linear -> evidence head."""
    Wp = W + 2
    LS = (H + 2) * Wp                                 # flattened padded spatial extent
    cout = w1_ref.shape[1]

    xp = xp_ref[0]                                    # (Cin, LP)  lane-dense image slab

    # 3x3 "same" conv, im2col fused in-kernel: 9 shift-accumulated matmuls -> (Cout, LS)
    acc = jnp.zeros((cout, LS), jnp.float32)
    for k in range(KSIZE * KSIZE):
        ky, kx = divmod(k, KSIZE)
        d = ky * Wp + kx
        acc = acc + jnp.dot(w1_ref[k], xp[:, d:d + LS],
                            preferred_element_type=jnp.float32)
    h = jnp.maximum(acc + b1_ref[...], 0.0)           # bias + ReLU (Cout, LS)

    # global average pool + border discard fused into one matmul:
    # mask = 1/(H*W) at valid spatial positions, 0 elsewhere -> pooled (1, Cout)
    pooled = lax.dot_general(mask_ref[...], h,
                             dimension_numbers=(((1,), (1,)), ((), ())),
                             preferred_element_type=jnp.float32)

    # classifier head: (1, Cout) @ (Cout, K) + (1, K)
    logits = jnp.dot(pooled, w2_ref[...],
                     preferred_element_type=jnp.float32) + b2_ref[...]

    # xEDL Dirichlet evidence head (exp evidence, prior=1), numerically stabilized:
    #   a = exp(logits) + prior ; proba = a / sum(a) ; unc = K*prior / sum(a)
    m = jnp.maximum(jnp.max(logits, axis=-1, keepdims=True), 0.0)
    e = jnp.exp(logits - m)                           # scaled evidence
    p0 = PRIOR * jnp.exp(-m)                          # scaled prior
    a0 = jnp.sum(e, axis=-1, keepdims=True) + N_CLASSES * p0
    inv_a0 = pl.reciprocal(a0, approx=False)
    proba = (e + p0) * inv_a0
    unc = (N_CLASSES * p0) * inv_a0

    # one lane-dense 128-wide output slab per image: [logits | proba | unc | zeros]
    pad = jnp.zeros((1, 128 - 2 * N_CLASSES - 1), jnp.float32)
    out_ref[0] = jnp.concatenate([logits, proba, unc, pad], axis=-1)


@jax.jit
def xedl_forward(x_nchw, params):
    """xEDLWrapper.forward (logits) + predict_proba + predict_epistemic in one kernel."""
    w1, b1, w2, b2 = params                           # w1: (Cout, Cin, 3, 3) PyTorch OIHW
    N, Cin, H, W = x_nchw.shape
    Cout = w1.shape[0]
    Hp, Wp = H + 2, W + 2
    LS = Hp * Wp
    LP = LS + 128 - (LS % 128) if LS % 128 else LS    # lane-pad to multiple of 128
    while LP - LS < 2 * Wp + 2:                       # slack for the 9 shifted slices
        LP += 128

    # per-image flattened, zero-padded input: (N, Cin, LP), spatial on the lane axis
    xp = jnp.pad(x_nchw, ((0, 0), (0, 0), (1, 1), (1, 1))).reshape(N, Cin, LS)
    xp = jnp.pad(xp, ((0, 0), (0, 0), (0, LP - LS)))
    # conv taps as (9, Cout, Cin) so the kernel does  w1t[k] @ shifted_slice
    w1t = jnp.transpose(w1, (2, 3, 0, 1)).reshape(KSIZE * KSIZE, Cout, Cin)
    b1c = b1.reshape(Cout, 1)
    b2r = b2.reshape(1, N_CLASSES)
    # pooling mask: 1/(H*W) at valid output positions of the padded grid, else 0
    mask = jnp.zeros((Hp, Wp), jnp.float32).at[:H, :W].set(1.0 / (H * W)).reshape(1, LS)

    def full(shape):
        return pl.BlockSpec(shape, lambda n: (0,) * len(shape))

    slab = pl.pallas_call(
        functools.partial(_xedl_kernel, H, W),
        out_shape=jax.ShapeDtypeStruct((N, 1, 128), jnp.float32),
        grid=(N,),
        in_specs=[
            pl.BlockSpec((1, Cin, LP), lambda n: (n, 0, 0)),   # one image per grid step
            full((KSIZE * KSIZE, Cout, Cin)),
            full((Cout, 1)),
            full((1, LS)),
            full((Cout, N_CLASSES)),
            full((1, N_CLASSES)),
        ],
        out_specs=pl.BlockSpec((1, 1, 128), lambda n: (n, 0, 0)),
        compiler_params=pltpu.CompilerParams(
            dimension_semantics=("parallel",),        # batch shards across v7x's 2 TCs
            vmem_limit_bytes=32 * 1024 * 1024,
        ),
    )(xp, w1t, b1c, mask, w2, b2r)

    slab = slab[:, 0, :]
    logits = slab[:, :N_CLASSES]
    proba = slab[:, N_CLASSES:2 * N_CLASSES]
    unc = slab[:, 2 * N_CLASSES:2 * N_CLASSES + 1]
    return logits, proba, unc


if __name__ == "__main__":
    key = jax.random.PRNGKey(0)
    k1, k2, k3, k4, k5 = jax.random.split(key, 5)
    N, Cin, H, W, Cout = 2, 4, 16, 16, 8

    x = jax.random.normal(k1, (N, Cin, H, W), jnp.float32)
    w1 = 0.1 * jax.random.normal(k2, (Cout, Cin, KSIZE, KSIZE), jnp.float32)  # OIHW
    b1 = 0.1 * jax.random.normal(k3, (Cout,), jnp.float32)
    w2 = 0.1 * jax.random.normal(k4, (Cout, N_CLASSES), jnp.float32)
    b2 = 0.1 * jax.random.normal(k5, (N_CLASSES,), jnp.float32)

    logits, proba, unc = xedl_forward(x, (w1, b1, w2, b2))
    jax.block_until_ready((logits, proba, unc))

    # pure-JAX reference for forward / predict_proba / predict_epistemic
    y = lax.conv_general_dilated(x, w1, (1, 1), "SAME",
                                 dimension_numbers=("NCHW", "OIHW", "NCHW"))
    y = jnp.maximum(y + b1[None, :, None, None], 0.0)
    pooled = y.mean(axis=(2, 3))
    logits_ref = pooled @ w2 + b2
    a_ref = jnp.exp(logits_ref) + PRIOR
    proba_ref = a_ref / a_ref.sum(-1, keepdims=True)
    unc_ref = N_CLASSES * PRIOR / a_ref.sum(-1, keepdims=True)

    assert jnp.allclose(logits, logits_ref, atol=1e-4, rtol=1e-4)
    assert jnp.allclose(proba, proba_ref, atol=1e-4, rtol=1e-4)
    assert jnp.allclose(unc, unc_ref, atol=1e-4, rtol=1e-4)
    print("KERNEL_OK")
</pallas_src>

<mosaic_0001>
module attributes {stable_mosaic.version = 11 : i64} {
  func.func @_xedl_kernel(%arg0: i32, %arg1: memref<1x4x384xf32, #tpu.memory_space<vmem>>, %arg2: memref<9x8x4xf32, #tpu.memory_space<vmem>>, %arg3: memref<8x1xf32, #tpu.memory_space<vmem>>, %arg4: memref<1x324xf32, #tpu.memory_space<vmem>>, %arg5: memref<8x10xf32, #tpu.memory_space<vmem>>, %arg6: memref<1x10xf32, #tpu.memory_space<vmem>>, %arg7: memref<1x1x128xf32, #tpu.memory_space<vmem>>) attributes {dimension_semantics = [#tpu.dimension_semantics<parallel>], iteration_bounds = array<i64: 2>, scalar_prefetch = 0 : i64, scratch_operands = 0 : i64, tpu.core_type = #tpu.core_type<tc>, window_params = [{transform_indices = @transform_0, window_bounds = array<i64: 1, 4, 384>}, {pipeline_mode = #tpu.pipeline_mode<synchronous>, transform_indices = @transform_1, window_bounds = array<i64: 9, 8, 4>}, {pipeline_mode = #tpu.pipeline_mode<synchronous>, transform_indices = @transform_2, window_bounds = array<i64: 8, 1>}, {pipeline_mode = #tpu.pipeline_mode<synchronous>, transform_indices = @transform_3, window_bounds = array<i64: 1, 324>}, {pipeline_mode = #tpu.pipeline_mode<synchronous>, transform_indices = @transform_4, window_bounds = array<i64: 8, 10>}, {pipeline_mode = #tpu.pipeline_mode<synchronous>, transform_indices = @transform_5, window_bounds = array<i64: 1, 10>}, {transform_indices = @transform_6, window_bounds = array<i64: 1, 1, 128>}]} {
    %c0 = arith.constant 0 : index
    %c0_0 = arith.constant 0 : index
    %c0_1 = arith.constant 0 : index
    %0 = vector.load %arg1[%c0, %c0_0, %c0_1] : memref<1x4x384xf32, #tpu.memory_space<vmem>>, vector<1x4x384xf32>
    %1 = vector.shape_cast %0 : vector<1x4x384xf32> to vector<4x384xf32>
    %cst = arith.constant 0.000000e+00 : f32
    %2 = vector.broadcast %cst : f32 to vector<8x324xf32>
    %c0_2 = arith.constant 0 : index
    %c0_3 = arith.constant 0 : index
    %c0_4 = arith.constant 0 : index
    %3 = vector.load %arg2[%c0_2, %c0_3, %c0_4] : memref<9x8x4xf32, #tpu.memory_space<vmem>>, vector<1x8x4xf32>
    %4 = vector.shape_cast %3 : vector<1x8x4xf32> to vector<8x4xf32>
    %5 = vector.extract_strided_slice %1 {offsets = [0, 0], sizes = [4, 324], strides = [1, 1]} : vector<4x384xf32> to vector<4x324xf32>
    %cst_5 = arith.constant dense<0.000000e+00> : vector<8x324xf32>
    %6 = tpu.matmul %4, %5, %cst_5 {dimension_numbers = #tpu.dot_dimension_numbers<[1], [0], [0], [1], [0, 0, 1, 1], [], []>} : vector<8x4xf32>, vector<4x324xf32>, vector<8x324xf32> -> vector<8x324xf32>
    %7 = arith.addf %2, %6 : vector<8x324xf32>
    %c1 = arith.constant 1 : index
    %c0_6 = arith.constant 0 : index
    %c0_7 = arith.constant 0 : index
    %8 = vector.load %arg2[%c1, %c0_6, %c0_7] : memref<9x8x4xf32, #tpu.memory_space<vmem>>, vector<1x8x4xf32>
    %9 = vector.shape_cast %8 : vector<1x8x4xf32> to vector<8x4xf32>
    %10 = vector.extract_strided_slice %1 {offsets = [0, 1], sizes = [4, 324], strides = [1, 1]} : vector<4x384xf32> to vector<4x324xf32>
    %cst_8 = arith.constant dense<0.000000e+00> : vector<8x324xf32>
    %11 = tpu.matmul %9, %10, %cst_8 {dimension_numbers = #tpu.dot_dimension_numbers<[1], [0], [0], [1], [0, 0, 1, 1], [], []>} : vector<8x4xf32>, vector<4x324xf32>, vector<8x324xf32> -> vector<8x324xf32>
    %12 = arith.addf %7, %11 : vector<8x324xf32>
    %c2 = arith.constant 2 : index
    %c0_9 = arith.constant 0 : index
    %c0_10 = arith.constant 0 : index
    %13 = vector.load %arg2[%c2, %c0_9, %c0_10] : memref<9x8x4xf32, #tpu.memory_space<vmem>>, vector<1x8x4xf32>
    %14 = vector.shape_cast %13 : vector<1x8x4xf32> to vector<8x4xf32>
    %15 = vector.extract_strided_slice %1 {offsets = [0, 2], sizes = [4, 324], strides = [1, 1]} : vector<4x384xf32> to vector<4x324xf32>
    %cst_11 = arith.constant dense<0.000000e+00> : vector<8x324xf32>
    %16 = tpu.matmul %14, %15, %cst_11 {dimension_numbers = #tpu.dot_dimension_numbers<[1], [0], [0], [1], [0, 0, 1, 1], [], []>} : vector<8x4xf32>, vector<4x324xf32>, vector<8x324xf32> -> vector<8x324xf32>
    %17 = arith.addf %12, %16 : vector<8x324xf32>
    %c3 = arith.constant 3 : index
    %c0_12 = arith.constant 0 : index
    %c0_13 = arith.constant 0 : index
    %18 = vector.load %arg2[%c3, %c0_12, %c0_13] : memref<9x8x4xf32, #tpu.memory_space<vmem>>, vector<1x8x4xf32>
    %19 = vector.shape_cast %18 : vector<1x8x4xf32> to vector<8x4xf32>
    %20 = vector.extract_strided_slice %1 {offsets = [0, 18], sizes = [4, 324], strides = [1, 1]} : vector<4x384xf32> to vector<4x324xf32>
    %cst_14 = arith.constant dense<0.000000e+00> : vector<8x324xf32>
    %21 = tpu.matmul %19, %20, %cst_14 {dimension_numbers = #tpu.dot_dimension_numbers<[1], [0], [0], [1], [0, 0, 1, 1], [], []>} : vector<8x4xf32>, vector<4x324xf32>, vector<8x324xf32> -> vector<8x324xf32>
    %22 = arith.addf %17, %21 : vector<8x324xf32>
    %c4 = arith.constant 4 : index
    %c0_15 = arith.constant 0 : index
    %c0_16 = arith.constant 0 : index
    %23 = vector.load %arg2[%c4, %c0_15, %c0_16] : memref<9x8x4xf32, #tpu.memory_space<vmem>>, vector<1x8x4xf32>
    %24 = vector.shape_cast %23 : vector<1x8x4xf32> to vector<8x4xf32>
    %25 = vector.extract_strided_slice %1 {offsets = [0, 19], sizes = [4, 324], strides = [1, 1]} : vector<4x384xf32> to vector<4x324xf32>
    %cst_17 = arith.constant dense<0.000000e+00> : vector<8x324xf32>
    %26 = tpu.matmul %24, %25, %cst_17 {dimension_numbers = #tpu.dot_dimension_numbers<[1], [0], [0], [1], [0, 0, 1, 1], [], []>} : vector<8x4xf32>, vector<4x324xf32>, vector<8x324xf32> -> vector<8x324xf32>
    %27 = arith.addf %22, %26 : vector<8x324xf32>
    %c5 = arith.constant 5 : index
    %c0_18 = arith.constant 0 : index
    %c0_19 = arith.constant 0 : index
    %28 = vector.load %arg2[%c5, %c0_18, %c0_19] : memref<9x8x4xf32, #tpu.memory_space<vmem>>, vector<1x8x4xf32>
    %29 = vector.shape_cast %28 : vector<1x8x4xf32> to vector<8x4xf32>
    %30 = vector.extract_strided_slice %1 {offsets = [0, 20], sizes = [4, 324], strides = [1, 1]} : vector<4x384xf32> to vector<4x324xf32>
    %cst_20 = arith.constant dense<0.000000e+00> : vector<8x324xf32>
    %31 = tpu.matmul %29, %30, %cst_20 {dimension_numbers = #tpu.dot_dimension_numbers<[1], [0], [0], [1], [0, 0, 1, 1], [], []>} : vector<8x4xf32>, vector<4x324xf32>, vector<8x324xf32> -> vector<8x324xf32>
    %32 = arith.addf %27, %31 : vector<8x324xf32>
    %c6 = arith.constant 6 : index
    %c0_21 = arith.constant 0 : index
    %c0_22 = arith.constant 0 : index
    %33 = vector.load %arg2[%c6, %c0_21, %c0_22] : memref<9x8x4xf32, #tpu.memory_space<vmem>>, vector<1x8x4xf32>
    %34 = vector.shape_cast %33 : vector<1x8x4xf32> to vector<8x4xf32>
    %35 = vector.extract_strided_slice %1 {offsets = [0, 36], sizes = [4, 324], strides = [1, 1]} : vector<4x384xf32> to vector<4x324xf32>
    %cst_23 = arith.constant dense<0.000000e+00> : vector<8x324xf32>
    %36 = tpu.matmul %34, %35, %cst_23 {dimension_numbers = #tpu.dot_dimension_numbers<[1], [0], [0], [1], [0, 0, 1, 1], [], []>} : vector<8x4xf32>, vector<4x324xf32>, vector<8x324xf32> -> vector<8x324xf32>
    %37 = arith.addf %32, %36 : vector<8x324xf32>
    %c7 = arith.constant 7 : index
    %c0_24 = arith.constant 0 : index
    %c0_25 = arith.constant 0 : index
    %38 = vector.load %arg2[%c7, %c0_24, %c0_25] : memref<9x8x4xf32, #tpu.memory_space<vmem>>, vector<1x8x4xf32>
    %39 = vector.shape_cast %38 : vector<1x8x4xf32> to vector<8x4xf32>
    %40 = vector.extract_strided_slice %1 {offsets = [0, 37], sizes = [4, 324], strides = [1, 1]} : vector<4x384xf32> to vector<4x324xf32>
    %cst_26 = arith.constant dense<0.000000e+00> : vector<8x324xf32>
    %41 = tpu.matmul %39, %40, %cst_26 {dimension_numbers = #tpu.dot_dimension_numbers<[1], [0], [0], [1], [0, 0, 1, 1], [], []>} : vector<8x4xf32>, vector<4x324xf32>, vector<8x324xf32> -> vector<8x324xf32>
    %42 = arith.addf %37, %41 : vector<8x324xf32>
    %c8 = arith.constant 8 : index
    %c0_27 = arith.constant 0 : index
    %c0_28 = arith.constant 0 : index
    %43 = vector.load %arg2[%c8, %c0_27, %c0_28] : memref<9x8x4xf32, #tpu.memory_space<vmem>>, vector<1x8x4xf32>
    %44 = vector.shape_cast %43 : vector<1x8x4xf32> to vector<8x4xf32>
    %45 = vector.extract_strided_slice %1 {offsets = [0, 38], sizes = [4, 324], strides = [1, 1]} : vector<4x384xf32> to vector<4x324xf32>
    %cst_29 = arith.constant dense<0.000000e+00> : vector<8x324xf32>
    %46 = tpu.matmul %44, %45, %cst_29 {dimension_numbers = #tpu.dot_dimension_numbers<[1], [0], [0], [1], [0, 0, 1, 1], [], []>} : vector<8x4xf32>, vector<4x324xf32>, vector<8x324xf32> -> vector<8x324xf32>
    %47 = arith.addf %42, %46 : vector<8x324xf32>
    %c0_30 = arith.constant 0 : index
    %c0_31 = arith.constant 0 : index
    %48 = vector.load %arg3[%c0_30, %c0_31] : memref<8x1xf32, #tpu.memory_space<vmem>>, vector<8x1xf32>
    %49 = vector.broadcast %48 : vector<8x1xf32> to vector<8x324xf32>
    %50 = arith.addf %47, %49 : vector<8x324xf32>
    %cst_32 = arith.constant 0.000000e+00 : f32
    %51 = vector.broadcast %cst_32 : f32 to vector<8x324xf32>
    %52 = arith.maximumf %50, %51 : vector<8x324xf32>
    %c0_33 = arith.constant 0 : index
    %c0_34 = arith.constant 0 : index
    %53 = vector.load %arg4[%c0_33, %c0_34] : memref<1x324xf32, #tpu.memory_space<vmem>>, vector<1x324xf32>
    %cst_35 = arith.constant dense<0.000000e+00> : vector<1x8xf32>
    %54 = tpu.matmul %53, %52, %cst_35 {dimension_numbers = #tpu.dot_dimension_numbers<[1], [1], [0], [0], [0, 0, 1, 0], [], []>} : vector<1x324xf32>, vector<8x324xf32>, vector<1x8xf32> -> vector<1x8xf32>
    %c0_36 = arith.constant 0 : index
    %c0_37 = arith.constant 0 : index
    %55 = vector.load %arg5[%c0_36, %c0_37] : memref<8x10xf32, #tpu.memory_space<vmem>>, vector<8x10xf32>
    %cst_38 = arith.constant dense<0.000000e+00> : vector<1x10xf32>
    %56 = tpu.matmul %54, %55, %cst_38 {dimension_numbers = #tpu.dot_dimension_numbers<[1], [0], [0], [1], [0, 0, 1, 1], [], []>} : vector<1x8xf32>, vector<8x10xf32>, vector<1x10xf32> -> vector<1x10xf32>
    %c0_39 = arith.constant 0 : index
    %c0_40 = arith.constant 0 : index
    %57 = vector.load %arg6[%c0_39, %c0_40] : memref<1x10xf32, #tpu.memory_space<vmem>>, vector<1x10xf32>
    %58 = arith.addf %56, %57 : vector<1x10xf32>
    %cst_41 = arith.constant dense<0xFF800000> : vector<1xf32>
    %59 = vector.multi_reduction <maximumf>, %58, %cst_41 [1] : vector<1x10xf32> to vector<1xf32>
    %60 = vector.shape_cast %59 : vector<1xf32> to vector<1x1xf32>
    %cst_42 = arith.constant 0.000000e+00 : f32
    %61 = vector.broadcast %cst_42 : f32 to vector<1x1xf32>
    %62 = arith.maximumf %60, %61 : vector<1x1xf32>
    %63 = vector.broadcast %62 : vector<1x1xf32> to vector<1x10xf32>
    %64 = arith.subf %58, %63 : vector<1x10xf32>
    %65 = math.exp %64 : vector<1x10xf32>
    %cst_43 = arith.constant 0.000000e+00 : f32
    %66 = vector.broadcast %cst_43 : f32 to vector<1x1xf32>
    %67 = arith.subf %66, %62 : vector<1x1xf32>
    %68 = math.exp %67 : vector<1x1xf32>
    %cst_44 = arith.constant 1.000000e+00 : f32
    %69 = vector.broadcast %cst_44 : f32 to vector<1x1xf32>
    %70 = arith.mulf %69, %68 : vector<1x1xf32>
    %cst_45 = arith.constant dense<0.000000e+00> : vector<1xf32>
    %71 = vector.multi_reduction <add>, %65, %cst_45 [1] : vector<1x10xf32> to vector<1xf32>
    %72 = vector.shape_cast %71 : vector<1xf32> to vector<1x1xf32>
    %cst_46 = arith.constant 1.000000e+01 : f32
    %73 = vector.broadcast %cst_46 : f32 to vector<1x1xf32>
    %74 = arith.mulf %73, %70 : vector<1x1xf32>
    %75 = arith.addf %72, %74 : vector<1x1xf32>
    %76 = tpu.reciprocal %75 : vector<1x1xf32> -> vector<1x1xf32>
    %77 = vector.broadcast %70 : vector<1x1xf32> to vector<1x10xf32>
    %78 = arith.addf %65, %77 : vector<1x10xf32>
    %79 = vector.broadcast %76 : vector<1x1xf32> to vector<1x10xf32>
    %80 = arith.mulf %78, %79 : vector<1x10xf32>
    %cst_47 = arith.constant 1.000000e+01 : f32
    %81 = vector.broadcast %cst_47 : f32 to vector<1x1xf32>
    %82 = arith.mulf %81, %70 : vector<1x1xf32>
    %83 = arith.mulf %82, %76 : vector<1x1xf32>
    %cst_48 = arith.constant 0.000000e+00 : f32
    %84 = vector.broadcast %cst_48 : f32 to vector<1x107xf32>
    %85 = tpu.concatenate %58, %80, %83, %84 in 1 : vector<1x10xf32>, vector<1x10xf32>, vector<1x1xf32>, vector<1x107xf32> -> vector<1x128xf32>
    %c0_49 = arith.constant 0 : index
    %c0_50 = arith.constant 0 : index
    %c0_51 = arith.constant 0 : index
    %86 = vector.load %arg7[%c0_49, %c0_50, %c0_51] : memref<1x1x128xf32, #tpu.memory_space<vmem>>, vector<1x1x128xf32>
    %87 = vector.shape_cast %86 : vector<1x1x128xf32> to vector<1x128xf32>
    %88 = vector.shape_cast %85 : vector<1x128xf32> to vector<1x1x128xf32>
    tpu.vector_store %arg7[%c0_49, %c0_50, %c0_51], %88 {strides = array<i32>} : memref<1x1x128xf32, #tpu.memory_space<vmem>>, vector<1x1x128xf32>,
    return
  }
  func.func @transform_0(%arg0: i32) -> (i32, i32, i32) {
    %c0_i32 = arith.constant 0 : i32
    %c0_i32_0 = arith.constant 0 : i32
    %c0_i32_1 = arith.constant 0 : i32
    return %arg0, %c0_i32, %c0_i32_0 : i32, i32, i32
  }
  func.func @transform_1(%arg0: i32) -> (i32, i32, i32) {
    %c0_i32 = arith.constant 0 : i32
    %c0_i32_0 = arith.constant 0 : i32
    %c0_i32_1 = arith.constant 0 : i32
    %c0_i32_2 = arith.constant 0 : i32
    return %c0_i32, %c0_i32_0, %c0_i32_1 : i32, i32, i32
  }
  func.func @transform_2(%arg0: i32) -> (i32, i32) {
    %c0_i32 = arith.constant 0 : i32
    %c0_i32_0 = arith.constant 0 : i32
    %c0_i32_1 = arith.constant 0 : i32
    return %c0_i32, %c0_i32_0 : i32, i32
  }
  func.func @transform_3(%arg0: i32) -> (i32, i32) {
    %c0_i32 = arith.constant 0 : i32
    %c0_i32_0 = arith.constant 0 : i32
    %c0_i32_1 = arith.constant 0 : i32
    return %c0_i32, %c0_i32_0 : i32, i32
  }
  func.func @transform_4(%arg0: i32) -> (i32, i32) {
    %c0_i32 = arith.constant 0 : i32
    %c0_i32_0 = arith.constant 0 : i32
    %c0_i32_1 = arith.constant 0 : i32
    return %c0_i32, %c0_i32_0 : i32, i32
  }
  func.func @transform_5(%arg0: i32) -> (i32, i32) {
    %c0_i32 = arith.constant 0 : i32
    %c0_i32_0 = arith.constant 0 : i32
    %c0_i32_1 = arith.constant 0 : i32
    return %c0_i32, %c0_i32_0 : i32, i32
  }
  func.func @transform_6(%arg0: i32) -> (i32, i32, i32) {
    %c0_i32 = arith.constant 0 : i32
    %c0_i32_0 = arith.constant 0 : i32
    %c0_i32_1 = arith.constant 0 : i32
    return %arg0, %c0_i32, %c0_i32_0 : i32, i32, i32
  }
}

</mosaic_0001>

<llo_original>
// kernel: xedl_forward.1
$region0: #{xedl_forward.1}
  #allocation0 [shape = 'u32[]', space=smem, size = 0x4, offset = 0x4, fixed_abs, tag = 'smem constant byte address 0x4 - core index']
  #allocation1 [shape = 'u32[144,128]{1,0:T(1,128)}', space=vmem, size = 0x12000, scoped, tag = 'internal scratch']
  %s0 = inlined_call_operand.vmem [shape: f32[2,4,384], index: 0, kind: input, shape index: {}]
  %s1 = inlined_call_operand.vmem [shape: f32[9,8,4], index: 1, kind: input, shape index: {}]
  %s2 = inlined_call_operand.vmem [shape: f32[8,1], index: 2, kind: input, shape index: {}]
  %s3 = inlined_call_operand.vmem [shape: f32[1,324], index: 3, kind: input, shape index: {}]
  %s4 = inlined_call_operand.vmem [shape: f32[8,10], index: 4, kind: input, shape index: {}]
  %s5 = inlined_call_operand.vmem [shape: f32[1,10], index: 5, kind: input, shape index: {}]
  %s6 = inlined_call_operand.vmem [shape: f32[2,1,128], index: 6, kind: output, shape index: {}]
  %s7 = sld [smem:[#allocation0]]
  $region57: #{xedl_forward.1} parent=0
    _
  %s9 = ssub.s32 1, %s7
  %s10 = scalar_select 0, %s9, %s7
  loop: start=0, step=1, limit=4
  $region2: #{xedl_forward.1} parent=0 // loop_pre_header
    _
  $region3: #{xedl_forward.1} parent=0 // loop_header
    %s12 = sphi 0, %s16
    %p13 = scmp.ge.s32.totalorder %s12, 4
    %s22 = sphi 0, %s24
    %s25 = sphi 0, %s22
    %s26 = sphi 0, %s25
    %s42 = sphi 0, %s26
    %s46 = sphi 0, %s46
    %s48 = sphi 0, %s46
    %s49 = sphi 0, %s48
    %s63 = sphi 0, %s49
    %s67 = sphi 0, %s67
    %s69 = sphi 0, %s67
    %s70 = sphi 0, %s69
    %s84 = sphi 0, %s70
    %s88 = sphi 0, %s88
    %s90 = sphi 0, %s88
    %s91 = sphi 0, %s90
    %s105 = sphi 0, %s91
    %s109 = sphi 0, %s109
    %s111 = sphi 0, %s109
    %s112 = sphi 0, %s111
    %s126 = sphi 0, %s112
    %s130 = sphi 0, %s130
    %s132 = sphi 0, %s130
    %s133 = sphi 0, %s132
    %s147 = sphi 0, %s133
    %s153 = sphi 0, %s155
    %s156 = sphi 0, %s153
    %s157 = sphi 0, %s156
    %s173 = sphi 0, %s157
  $region4: #{xedl_forward.1} parent=0 // loop_header_branch
    %15 = sbr.rel (%p13) target = $region8
  $region5: #{xedl_forward.1} parent=0 // loop_body
    %s17 = ssub.s32 %s12, 1
    %s18 = ssub.s32 %s12, 2
    %s19 = sadd.s32 %s12, 1
    %s20 = ssub.s32 %s12, %s19
    %p21 = scmp.eq.s32.totalorder %s20, 0
    %s23 = sadd.s32 %s22, 1
    %s24 = scalar_select %p21, %s22, %s23
    %p27 = pneg %p21
    %p28 = scmp.eq.s32.totalorder %s12, 1
    %p29 = por %p27, %p28
    %p30 = scmp.ne.s32.totalorder %s22, %s25
    %p31 = scmp.eq.s32.totalorder %s12, 0
    %p32 = por %p30, %p31
    %p33 = scmp.ne.s32.totalorder %s22, %s25
    %p34 = scmp.eq.s32.totalorder %s17, 1
    %p35 = por %p33, %p34
    %p36 = scmp.ne.s32.totalorder %s25, %s26
    %p37 = scmp.eq.s32.totalorder %s17, 0
    %p38 = por %p36, %p37
    %p39 = scmp.ne.s32.totalorder %s25, %s26
    %p40 = scmp.eq.s32.totalorder %s18, 1
    %p41 = por %p39, %p40
    %p43 = scmp.ne.s32.totalorder %s26, %s42
    %p44 = scmp.eq.s32.totalorder %s18, 0
    %p45 = por %p43, %p44
    %s47 = sadd.s32 %s46, 1
    %p50 = scmp.eq.s32.totalorder %s12, 1
    %p51 = scmp.ne.s32.totalorder %s46, %s48
    %p52 = scmp.eq.s32.totalorder %s12, 0
    %p53 = por %p51, %p52
    %p54 = scmp.ne.s32.totalorder %s46, %s48
    %p55 = scmp.eq.s32.totalorder %s17, 1
    %p56 = por %p54, %p55
    %p57 = scmp.ne.s32.totalorder %s48, %s49
    %p58 = scmp.eq.s32.totalorder %s17, 0
    %p59 = por %p57, %p58
    %p60 = scmp.ne.s32.totalorder %s48, %s49
    %p61 = scmp.eq.s32.totalorder %s18, 1
    %p62 = por %p60, %p61
    %p64 = scmp.ne.s32.totalorder %s49, %s63
    %p65 = scmp.eq.s32.totalorder %s18, 0
    %p66 = por %p64, %p65
    %s68 = sadd.s32 %s67, 1
    %p71 = scmp.eq.s32.totalorder %s12, 1
    %p72 = scmp.ne.s32.totalorder %s67, %s69
    %p73 = scmp.eq.s32.totalorder %s12, 0
    %p74 = por %p72, %p73
    %p75 = scmp.ne.s32.totalorder %s67, %s69
    %p76 = scmp.eq.s32.totalorder %s17, 1
    %p77 = por %p75, %p76
    %p78 = scmp.ne.s32.totalorder %s69, %s70
    %p79 = scmp.eq.s32.totalorder %s17, 0
    %p80 = por %p78, %p79
    %p81 = scmp.ne.s32.totalorder %s69, %s70
    %p82 = scmp.eq.s32.totalorder %s18, 1
    %p83 = por %p81, %p82
    %p85 = scmp.ne.s32.totalorder %s70, %s84
    %p86 = scmp.eq.s32.totalorder %s18, 0
    %p87 = por %p85, %p86
    %s89 = sadd.s32 %s88, 1
    %p92 = scmp.eq.s32.totalorder %s12, 1
    %p93 = scmp.ne.s32.totalorder %s88, %s90
    %p94 = scmp.eq.s32.totalorder %s12, 0
    %p95 = por %p93, %p94
    %p96 = scmp.ne.s32.totalorder %s88, %s90
    %p97 = scmp.eq.s32.totalorder %s17, 1
    %p98 = por %p96, %p97
    %p99 = scmp.ne.s32.totalorder %s90, %s91
    %p100 = scmp.eq.s32.totalorder %s17, 0
    %p101 = por %p99, %p100
    %p102 = scmp.ne.s32.totalorder %s90, %s91
    %p103 = scmp.eq.s32.totalorder %s18, 1
    %p104 = por %p102, %p103
    %p106 = scmp.ne.s32.totalorder %s91, %s105
    %p107 = scmp.eq.s32.totalorder %s18, 0
    %p108 = por %p106, %p107
    %s110 = sadd.s32 %s109, 1
    %p113 = scmp.eq.s32.totalorder %s12, 1
    %p114 = scmp.ne.s32.totalorder %s109, %s111
    %p115 = scmp.eq.s32.totalorder %s12, 0
    %p116 = por %p114, %p115
    %p117 = scmp.ne.s32.totalorder %s109, %s111
    %p118 = scmp.eq.s32.totalorder %s17, 1
    %p119 = por %p117, %p118
    %p120 = scmp.ne.s32.totalorder %s111, %s112
    %p121 = scmp.eq.s32.totalorder %s17, 0
    %p122 = por %p120, %p121
    %p123 = scmp.ne.s32.totalorder %s111, %s112
    %p124 = scmp.eq.s32.totalorder %s18, 1
    %p125 = por %p123, %p124
    %p127 = scmp.ne.s32.totalorder %s112, %s126
    %p128 = scmp.eq.s32.totalorder %s18, 0
    %p129 = por %p127, %p128
    %s131 = sadd.s32 %s130, 1
    %p134 = scmp.eq.s32.totalorder %s12, 1
    %p135 = scmp.ne.s32.totalorder %s130, %s132
    %p136 = scmp.eq.s32.totalorder %s12, 0
    %p137 = por %p135, %p136
    %p138 = scmp.ne.s32.totalorder %s130, %s132
    %p139 = scmp.eq.s32.totalorder %s17, 1
    %p140 = por %p138, %p139
    %p141 = scmp.ne.s32.totalorder %s132, %s133
    %p142 = scmp.eq.s32.totalorder %s17, 0
    %p143 = por %p141, %p142
    %p144 = scmp.ne.s32.totalorder %s132, %s133
    %p145 = scmp.eq.s32.totalorder %s18, 1
    %p146 = por %p144, %p145
    %p148 = scmp.ne.s32.totalorder %s133, %s147
    %p149 = scmp.eq.s32.totalorder %s18, 0
    %p150 = por %p148, %p149
    %s151 = ssub.s32 %s12, %s19
    %p152 = scmp.eq.s32.totalorder %s151, 0
    %s154 = sadd.s32 %s153, 1
    %s155 = scalar_select %p152, %s153, %s154
    %p158 = pneg %p152
    %p159 = scmp.eq.s32.totalorder %s12, 1
    %p160 = por %p158, %p159
    %p161 = scmp.ne.s32.totalorder %s153, %s156
    %p162 = scmp.eq.s32.totalorder %s12, 0
    %p163 = por %p161, %p162
    %p164 = scmp.ne.s32.totalorder %s153, %s156
    %p165 = scmp.eq.s32.totalorder %s17, 1
    %p166 = por %p164, %p165
    %p167 = scmp.ne.s32.totalorder %s156, %s157
    %p168 = scmp.eq.s32.totalorder %s17, 0
    %p169 = por %p167, %p168
    %p170 = scmp.ne.s32.totalorder %s156, %s157
    %p171 = scmp.eq.s32.totalorder %s18, 1
    %p172 = por %p170, %p171
    %p174 = scmp.ne.s32.totalorder %s157, %s173
    %p175 = scmp.eq.s32.totalorder %s18, 0
    %p176 = por %p174, %p175
    %p177 = scmp.le.s32.totalorder 1, %s12
    %p178 = scmp.lt.s32.totalorder %s12, 3
    %p179 = pnand %p177, %p178
    %p180 = pneg %p179
    // Predicated region
    $region9: #{xedl_forward.1} parent=5 // pred_check
      _
    $region10: #{xedl_forward.1} parent=5 // pred_check_branch
      %182 = sbr.rel (%p179) target = $region12
    $region11: #{xedl_forward.1} parent=5 // pred_region
      %s183 = ssub.s32 %s12, 1
      // Predicated region
      $region13: #{xedl_forward.1} parent=11 // pred_check
        %p184 = pneg %p59
      $region14: #{xedl_forward.1} parent=11 // pred_check_branch
        %186 = sbr.rel (%p184) target = $region16
      $region15: #{xedl_forward.1} parent=11 // pred_region
        _
      $region16: #{xedl_forward.1} parent=11 // pred_fallthru
        _
      // Predicated region
      $region17: #{xedl_forward.1} parent=11 // pred_check
        %p187 = pneg %p80
      $region18: #{xedl_forward.1} parent=11 // pred_check_branch
        %189 = sbr.rel (%p187) target = $region20
      $region19: #{xedl_forward.1} parent=11 // pred_region
        _
      $region20: #{xedl_forward.1} parent=11 // pred_fallthru
        _
      // Predicated region
      $region21: #{xedl_forward.1} parent=11 // pred_check
        %p190 = pneg %p101
      $region22: #{xedl_forward.1} parent=11 // pred_check_branch
        %192 = sbr.rel (%p190) target = $region24
      $region23: #{xedl_forward.1} parent=11 // pred_region
        _
      $region24: #{xedl_forward.1} parent=11 // pred_fallthru
        _
      // Predicated region
      $region25: #{xedl_forward.1} parent=11 // pred_check
        %p193 = pneg %p122
      $region26: #{xedl_forward.1} parent=11 // pred_check_branch
        %195 = sbr.rel (%p193) target = $region28
      $region27: #{xedl_forward.1} parent=11 // pred_region
        _
      $region28: #{xedl_forward.1} parent=11 // pred_fallthru
        _
      // Predicated region
      $region29: #{xedl_forward.1} parent=11 // pred_check
        %p196 = pneg %p143
      $region30: #{xedl_forward.1} parent=11 // pred_check_branch
        %198 = sbr.rel (%p196) target = $region32
      $region31: #{xedl_forward.1} parent=11 // pred_region
        _
      $region32: #{xedl_forward.1} parent=11 // pred_fallthru
        _
    $region12: #{xedl_forward.1} parent=5 // pred_fallthru
      _
    %p199 = scmp.lt.s32.totalorder %s12, 2
    // Predicated region
    $region33: #{xedl_forward.1} parent=5 // pred_check
      %p200 = pneg %p199
    $region34: #{xedl_forward.1} parent=5 // pred_check_branch
      %202 = sbr.rel (%p200) target = $region36
    $region35: #{xedl_forward.1} parent=5 // pred_region
      // Predicated region
      $region37: #{xedl_forward.1} parent=35 // pred_check
        %p203 = pneg %p32
      $region38: #{xedl_forward.1} parent=35 // pred_check_branch
        %205 = sbr.rel (%p203) target = $region40
      $region39: #{xedl_forward.1} parent=35 // pred_region
        %p206 = scmp.lt.s32.totalorder %s12, 1
        %s207 = scalar_select %p206, %s12, 1
        %s208 = smul.addr %s207, 3
        %s209 = smul.addr %s208, 4
        %s210 = scalar_lea.vmem %s0, %s209
      $region40: #{xedl_forward.1} parent=35 // pred_fallthru
        _
    $region36: #{xedl_forward.1} parent=5 // pred_fallthru
      _
    %p211 = scmp.le.s32.totalorder 1, %s12
    %p212 = scmp.lt.s32.totalorder %s12, 3
    %p213 = pnand %p211, %p212
    %p214 = pneg %p213
    // Predicated region
    $region41: #{xedl_forward.1} parent=5 // pred_check
      _
    $region42: #{xedl_forward.1} parent=5 // pred_check_branch
      %216 = sbr.rel (%p213) target = $region44
    $region43: #{xedl_forward.1} parent=5 // pred_region
      %s217 = ssub.s32 %s12, 1
      %p218 = scmp.lt.s32.totalorder %s17, 1
      %s219 = scalar_select %p218, %s17, 1
      %s220 = smul.addr %s219, 3
      %s221 = smul.addr %s220, 4
      %s222 = scalar_lea.vmem %s0, %s221
      %p223 = pneg %p38
      %p224 = pneg %p35
      %p225 = pneg %p59
      %p226 = pneg %p56
      %p227 = pneg %p80
      %p228 = pneg %p77
      %p229 = pneg %p101
      %p230 = pneg %p98
      %p231 = pneg %p122
      %p232 = pneg %p119
      %p233 = pneg %p143
      %p234 = pneg %p140
      %p235 = pneg %p169
      %p236 = pneg %p166
      %p237 = scmp.lt.s32.totalorder %s17, 1
      %s238 = scalar_select %p237, %s17, 1
      %s239 = scalar_lea.vmem %s6, %s238
      %p240 = scmp.lt.s32.totalorder %s17, 1
      %s241 = scalar_select %p240, %s17, 1
      %s242 = smul.addr %s241, 3
      %s243 = smul.addr %s242, 4
      %s244 = scalar_lea.vmem %s0, %s243
      %p245 = scmp.lt.s32.totalorder %s17, 1
      %s246 = scalar_select %p245, %s17, 1
      %s247 = scalar_lea.vmem %s6, %s246
      %v248 = vld [vmem:[%s244] sm:$0xff]
      %v249 = vld [vmem:[%s244 + $0x8] sm:$0xf]
      %v250 = vld [vmem:[%s1] sm:$0xff]
      %s251 = scalar_lea.vmem %s1, 8
      %v252 = vld [vmem:[%s251] sm:$0xff]
      %v255 = vcombine.high %v248, %v248
      %256 = vrot.lane.b32.xlu0 %v248, 127
      %v257 = vpop.permute.xlu0 %256
      %258 = vrot.lane.b32.xlu0 %v255, 127
      %v259 = vpop.permute.xlu0 %258
      %260 = vrot.lane.b32.xlu0 %v249, 127
      %v261 = vpop.permute.xlu0 %260
      %vm262 = vcmask 1039360
      %v263 = vsel %vm262, %v257, %v259
      %v264 = vsel %vm262, %v259, %v261
      %vm265 = vcmask 31744
      %v267 = vsel %vm265, %v252, 0
      %vm269 = vcmask 1043456
      %v270 = vsel %vm269, %v263, 0
      %v272 = vsel %vm269, %v264, 0
      %v274 = vsel %vm269, %v261, 0
      %276 = vmatprep.subr.mxu0 %v272
      %277 = vmatpush1.msra.mxu0 %v270
      %278 = vmatprep.subr.mxu0 0.0
      %279 = vmatpush1.msra.mxu0 0.0
      %280 = vmatprep.subr.mxu0 0.0
      %281 = vmatpush1.msra.mxu0 0.0
      %282 = vmatprep.subr.mxu0 0.0
      %283 = vmatpush1.msra.mxu0 0.0
      %284 = vmatprep.subr.mxu0 0.0
      %285 = vmatpush1.msra.mxu0 0.0
      %286 = vmatprep.subr.mxu0 0.0
      %287 = vmatpush1.msra.mxu0 0.0
      %288 = vmatprep.subr.mxu0 0.0
      %289 = vmatpush1.msra.mxu0 0.0
      %290 = vmatprep.subr.mxu0 0.0
      %291 = vmatpush1.msra.mxu0 0.0
      %292 = vmatprep.subr.mxu0 0.0
      %293 = vmatpush1.msra.mxu0 0.0
      %294 = vmatprep.subr.mxu0 0.0
      %295 = vmatpush1.msra.mxu0 0.0
      %296 = vmatprep.subr.mxu0 0.0
      %297 = vmatpush1.msra.mxu0 0.0
      %298 = vmatprep.subr.mxu0 0.0
      %299 = vmatpush1.msra.mxu0 0.0
      %300 = vmatprep.subr.mxu0 0.0
      %301 = vmatpush1.msra.mxu0 0.0
      %302 = vmatprep.subr.mxu0 0.0
      %303 = vmatpush1.msra.mxu0 0.0
      %304 = vmatprep.subr.mxu0 0.0
      %305 = vmatpush1.msra.mxu0 0.0
      %306 = vmatprep.subr.mxu0 0.0
      %307 = vmatpush1.msra.mxu0 0.0
      %308 = vmatprep.subr.mxu0 0.0
      %309 = vmatpush1.msra.mxu0 0.0
      %310 = vmatprep.subr.mxu0 0.0
      %311 = vmatpush1.msra.mxu0 0.0
      %312 = vmatprep.subr.mxu0 0.0
      %313 = vmatpush1.msra.mxu0 0.0
      %314 = vmatprep.subr.mxu0 0.0
      %315 = vmatpush1.msra.mxu0 0.0
      %316 = vmatprep.subr.mxu0 0.0
      %317 = vmatpush1.msra.mxu0 0.0
      %318 = vmatprep.subr.mxu0 0.0
      %319 = vmatpush1.msra.mxu0 0.0
      %320 = vmatprep.subr.mxu0 0.0
      %321 = vmatpush1.msra.mxu0 0.0
      %322 = vmatprep.subr.mxu0 0.0
      %323 = vmatpush1.msra.mxu0 0.0
      %324 = vmatprep.subr.mxu0 0.0
      %325 = vmatpush1.msra.mxu0 0.0
      %326 = vmatprep.subr.mxu0 0.0
      %327 = vmatpush1.msra.mxu0 0.0
      %328 = vmatprep.subr.mxu0 0.0
      %329 = vmatpush1.msra.mxu0 0.0
      %330 = vmatprep.subr.mxu0 0.0
      %331 = vmatpush1.msra.mxu0 0.0
      %332 = vmatprep.subr.mxu0 0.0
      %333 = vmatpush1.msra.mxu0 0.0
      %334 = vmatprep.subr.mxu0 0.0
      %335 = vmatpush1.msra.mxu0 0.0
      %336 = vmatprep.subr.mxu0 0.0
      %337 = vmatpush1.msra.mxu0 0.0
      %338 = vmatprep.subr.mxu0 0.0
      %339 = vmatpush1.msra.mxu0 0.0
      %340 = vmatprep.mubr.f32.mxu0 0.0
      %341 = vmatmul.mubr.f32.gmra.mrb[0].mxu0 %v267
      %v342 = vpop.f32.mrb[0].mxu0
      %v343 = vadd.f32 0.0, %v342
      %v344 = vpop.f32.mrb[0].mxu0
      %v345 = vadd.f32 0.0, %v344
      %346 = vdwg.mxu0
      %347 = vmatprep.subr.mxu0 0.0
      %348 = vmatpush1.msra.mxu0 %v274
      %349 = vmatprep.subr.mxu0 0.0
      %350 = vmatpush1.msra.mxu0 0.0
      %351 = vmatprep.subr.mxu0 0.0
      %352 = vmatpush1.msra.mxu0 0.0
      %353 = vmatprep.subr.mxu0 0.0
      %354 = vmatpush1.msra.mxu0 0.0
      %355 = vmatprep.subr.mxu0 0.0
      %356 = vmatpush1.msra.mxu0 0.0
      %357 = vmatprep.subr.mxu0 0.0
      %358 = vmatpush1.msra.mxu0 0.0
      %359 = vmatprep.subr.mxu0 0.0
      %360 = vmatpush1.msra.mxu0 0.0
      %361 = vmatprep.subr.mxu0 0.0
      %362 = vmatpush1.msra.mxu0 0.0
      %363 = vmatprep.subr.mxu0 0.0
      %364 = vmatpush1.msra.mxu0 0.0
      %365 = vmatprep.subr.mxu0 0.0
      %366 = vmatpush1.msra.mxu0 0.0
      %367 = vmatprep.subr.mxu0 0.0
      %368 = vmatpush1.msra.mxu0 0.0
      %369 = vmatprep.subr.mxu0 0.0
      %370 = vmatpush1.msra.mxu0 0.0
      %371 = vmatprep.subr.mxu0 0.0
      %372 = vmatpush1.msra.mxu0 0.0
      %373 = vmatprep.subr.mxu0 0.0
      %374 = vmatpush1.msra.mxu0 0.0
      %375 = vmatprep.subr.mxu0 0.0
      %376 = vmatpush1.msra.mxu0 0.0
      %377 = vmatprep.subr.mxu0 0.0
      %378 = vmatpush1.msra.mxu0 0.0
      %379 = vmatprep.subr.mxu0 0.0
      %380 = vmatpush1.msra.mxu0 0.0
      %381 = vmatprep.subr.mxu0 0.0
      %382 = vmatpush1.msra.mxu0 0.0
      %383 = vmatprep.subr.mxu0 0.0
      %384 = vmatpush1.msra.mxu0 0.0
      %385 = vmatprep.subr.mxu0 0.0
      %386 = vmatpush1.msra.mxu0 0.0
      %387 = vmatprep.subr.mxu0 0.0
      %388 = vmatpush1.msra.mxu0 0.0
      %389 = vmatprep.subr.mxu0 0.0
      %390 = vmatpush1.msra.mxu0 0.0
      %391 = vmatprep.subr.mxu0 0.0
      %392 = vmatpush1.msra.mxu0 0.0
      %393 = vmatprep.subr.mxu0 0.0
      %394 = vmatpush1.msra.mxu0 0.0
      %395 = vmatprep.subr.mxu0 0.0
      %396 = vmatpush1.msra.mxu0 0.0
      %397 = vmatprep.subr.mxu0 0.0
      %398 = vmatpush1.msra.mxu0 0.0
      %399 = vmatprep.subr.mxu0 0.0
      %400 = vmatpush1.msra.mxu0 0.0
      %401 = vmatprep.subr.mxu0 0.0
      %402 = vmatpush1.msra.mxu0 0.0
      %403 = vmatprep.subr.mxu0 0.0
      %404 = vmatpush1.msra.mxu0 0.0
      %405 = vmatprep.subr.mxu0 0.0
      %406 = vmatpush1.msra.mxu0 0.0
      %407 = vmatprep.subr.mxu0 0.0
      %408 = vmatpush1.msra.mxu0 0.0
      %409 = vmatprep.subr.mxu0 0.0
      %410 = vmatpush1.msra.mxu0 0.0
      %411 = vmatprep.mubr.f32.mxu0 0.0
      %412 = vmatmul.mubr.f32.gmra.mrb[0].mxu0 %v267
      %v413 = vpop.f32.mrb[0].mxu0
      %v414 = vadd.f32 0.0, %v413
      %v415 = vpop.f32.mrb[0].mxu0
      %416 = vdwg.mxu0
      %v418 = vsel %vm265, %v250, 0
      %v420 = vsel %vm269, %v248, 0
      %v422 = vsel %vm269, %v255, 0
      %v424 = vsel %vm269, %v249, 0
      %426 = vmatprep.subr.mxu0 %v422
      %427 = vmatpush1.msra.mxu0 %v420
      %428 = vmatprep.subr.mxu0 0.0
      %429 = vmatpush1.msra.mxu0 0.0
      %430 = vmatprep.subr.mxu0 0.0
      %431 = vmatpush1.msra.mxu0 0.0
      %432 = vmatprep.subr.mxu0 0.0
      %433 = vmatpush1.msra.mxu0 0.0
      %434 = vmatprep.subr.mxu0 0.0
      %435 = vmatpush1.msra.mxu0 0.0
      %436 = vmatprep.subr.mxu0 0.0
      %437 = vmatpush1.msra.mxu0 0.0
      %438 = vmatprep.subr.mxu0 0.0
      %439 = vmatpush1.msra.mxu0 0.0
      %440 = vmatprep.subr.mxu0 0.0
      %441 = vmatpush1.msra.mxu0 0.0
      %442 = vmatprep.subr.mxu0 0.0
      %443 = vmatpush1.msra.mxu0 0.0
      %444 = vmatprep.subr.mxu0 0.0
      %445 = vmatpush1.msra.mxu0 0.0
      %446 = vmatprep.subr.mxu0 0.0
      %447 = vmatpush1.msra.mxu0 0.0
      %448 = vmatprep.subr.mxu0 0.0
      %449 = vmatpush1.msra.mxu0 0.0
      %450 = vmatprep.subr.mxu0 0.0
      %451 = vmatpush1.msra.mxu0 0.0
      %452 = vmatprep.subr.mxu0 0.0
      %453 = vmatpush1.msra.mxu0 0.0
      %454 = vmatprep.subr.mxu0 0.0
      %455 = vmatpush1.msra.mxu0 0.0
      %456 = vmatprep.subr.mxu0 0.0
      %457 = vmatpush1.msra.mxu0 0.0
      %458 = vmatprep.subr.mxu0 0.0
      %459 = vmatpush1.msra.mxu0 0.0
      %460 = vmatprep.subr.mxu0 0.0
      %461 = vmatpush1.msra.mxu0 0.0
      %462 = vmatprep.subr.mxu0 0.0
      %463 = vmatpush1.msra.mxu0 0.0
      %464 = vmatprep.subr.mxu0 0.0
      %465 = vmatpush1.msra.mxu0 0.0
      %466 = vmatprep.subr.mxu0 0.0
      %467 = vmatpush1.msra.mxu0 0.0
      %468 = vmatprep.subr.mxu0 0.0
      %469 = vmatpush1.msra.mxu0 0.0
      %470 = vmatprep.subr.mxu0 0.0
      %471 = vmatpush1.msra.mxu0 0.0
      %472 = vmatprep.subr.mxu0 0.0
      %473 = vmatpush1.msra.mxu0 0.0
      %474 = vmatprep.subr.mxu0 0.0
      %475 = vmatpush1.msra.mxu0 0.0
      %476 = vmatprep.subr.mxu0 0.0
      %477 = vmatpush1.msra.mxu0 0.0
      %478 = vmatprep.subr.mxu0 0.0
      %479 = vmatpush1.msra.mxu0 0.0
      %480 = vmatprep.subr.mxu0 0.0
      %481 = vmatpush1.msra.mxu0 0.0
      %482 = vmatprep.subr.mxu0 0.0
      %483 = vmatpush1.msra.mxu0 0.0
      %484 = vmatprep.subr.mxu0 0.0
      %485 = vmatpush1.msra.mxu0 0.0
      %486 = vmatprep.subr.mxu0 0.0
      %487 = vmatpush1.msra.mxu0 0.0
      %488 = vmatprep.subr.mxu0 0.0
      %489 = vmatpush1.msra.mxu0 0.0
      %490 = vmatprep.mubr.f32.mxu0 0.0
      %491 = vmatmul.mubr.f32.gmra.mrb[0].mxu0 %v418
      %v492 = vpop.f32.mrb[0].mxu0
      %v493 = vadd.f32 %v343, %v492
      %v494 = vpop.f32.mrb[0].mxu0
      %v495 = vadd.f32 %v345, %v494
      %496 = vdwg.mxu0
      %497 = vmatprep.subr.mxu0 0.0
      %498 = vmatpush1.msra.mxu0 %v424
      %499 = vmatprep.subr.mxu0 0.0
      %500 = vmatpush1.msra.mxu0 0.0
      %501 = vmatprep.subr.mxu0 0.0
      %502 = vmatpush1.msra.mxu0 0.0
      %503 = vmatprep.subr.mxu0 0.0
      %504 = vmatpush1.msra.mxu0 0.0
      %505 = vmatprep.subr.mxu0 0.0
      %506 = vmatpush1.msra.mxu0 0.0
      %507 = vmatprep.subr.mxu0 0.0
      %508 = vmatpush1.msra.mxu0 0.0
      %509 = vmatprep.subr.mxu0 0.0
      %510 = vmatpush1.msra.mxu0 0.0
      %511 = vmatprep.subr.mxu0 0.0
      %512 = vmatpush1.msra.mxu0 0.0
      %513 = vmatprep.subr.mxu0 0.0
      %514 = vmatpush1.msra.mxu0 0.0
      %515 = vmatprep.subr.mxu0 0.0
      %516 = vmatpush1.msra.mxu0 0.0
      %517 = vmatprep.subr.mxu0 0.0
      %518 = vmatpush1.msra.mxu0 0.0
      %519 = vmatprep.subr.mxu0 0.0
      %520 = vmatpush1.msra.mxu0 0.0
      %521 = vmatprep.subr.mxu0 0.0
      %522 = vmatpush1.msra.mxu0 0.0
      %523 = vmatprep.subr.mxu0 0.0
      %524 = vmatpush1.msra.mxu0 0.0
      %525 = vmatprep.subr.mxu0 0.0
      %526 = vmatpush1.msra.mxu0 0.0
      %527 = vmatprep.subr.mxu0 0.0
      %528 = vmatpush1.msra.mxu0 0.0
      %529 = vmatprep.subr.mxu0 0.0
      %530 = vmatpush1.msra.mxu0 0.0
      %531 = vmatprep.subr.mxu0 0.0
      %532 = vmatpush1.msra.mxu0 0.0
      %533 = vmatprep.subr.mxu0 0.0
      %534 = vmatpush1.msra.mxu0 0.0
      %535 = vmatprep.subr.mxu0 0.0
      %536 = vmatpush1.msra.mxu0 0.0
      %537 = vmatprep.subr.mxu0 0.0
      %538 = vmatpush1.msra.mxu0 0.0
      %539 = vmatprep.subr.mxu0 0.0
      %540 = vmatpush1.msra.mxu0 0.0
      %541 = vmatprep.subr.mxu0 0.0
      %542 = vmatpush1.msra.mxu0 0.0
      %543 = vmatprep.subr.mxu0 0.0
      %544 = vmatpush1.msra.mxu0 0.0
      %545 = vmatprep.subr.mxu0 0.0
      %546 = vmatpush1.msra.mxu0 0.0
      %547 = vmatprep.subr.mxu0 0.0
      %548 = vmatpush1.msra.mxu0 0.0
      %549 = vmatprep.subr.mxu0 0.0
      %550 = vmatpush1.msra.mxu0 0.0
      %551 = vmatprep.subr.mxu0 0.0
      %552 = vmatpush1.msra.mxu0 0.0
      %553 = vmatprep.subr.mxu0 0.0
      %554 = vmatpush1.msra.mxu0 0.0
      %555 = vmatprep.subr.mxu0 0.0
      %556 = vmatpush1.msra.mxu0 0.0
      %557 = vmatprep.subr.mxu0 0.0
      %558 = vmatpush1.msra.mxu0 0.0
      %559 = vmatprep.subr.mxu0 0.0
      %560 = vmatpush1.msra.mxu0 0.0
      %561 = vmatprep.mubr.f32.mxu0 0.0
      %562 = vmatmul.mubr.f32.gmra.mrb[0].mxu0 %v418
      %v563 = vpop.f32.mrb[0].mxu0
      %v564 = vadd.f32 %v414, %v563
      %v565 = vpop.f32.mrb[0].mxu0
      %566 = vdwg.mxu0
      %s567 = scalar_lea.vmem %s1, 16
      %v568 = vld [vmem:[%s567] sm:$0xff]
      %569 = vrot.lane.b32.xlu0 %v248, 126
      %v570 = vpop.permute.xlu0 %569
      %571 = vrot.lane.b32.xlu0 %v255, 126
      %v572 = vpop.permute.xlu0 %571
      %573 = vrot.lane.b32.xlu0 %v249, 126
      %v574 = vpop.permute.xlu0 %573
      %vm575 = vcmask 1031168
      %v576 = vsel %vm575, %v570, %v572
      %v577 = vsel %vm575, %v572, %v574
      %v579 = vsel %vm265, %v568, 0
      %v581 = vsel %vm269, %v576, 0
      %v583 = vsel %vm269, %v577, 0
      %v585 = vsel %vm269, %v574, 0
      %587 = vmatprep.subr.mxu0 %v583
      %588 = vmatpush1.msra.mxu0 %v581
      %589 = vmatprep.subr.mxu0 0.0
      %590 = vmatpush1.msra.mxu0 0.0
      %591 = vmatprep.subr.mxu0 0.0
      %592 = vmatpush1.msra.mxu0 0.0
      %593 = vmatprep.subr.mxu0 0.0
      %594 = vmatpush1.msra.mxu0 0.0
      %595 = vmatprep.subr.mxu0 0.0
      %596 = vmatpush1.msra.mxu0 0.0
      %597 = vmatprep.subr.mxu0 0.0
      %598 = vmatpush1.msra.mxu0 0.0
      %599 = vmatprep.subr.mxu0 0.0
      %600 = vmatpush1.msra.mxu0 0.0
      %601 = vmatprep.subr.mxu0 0.0
      %602 = vmatpush1.msra.mxu0 0.0
      %603 = vmatprep.subr.mxu0 0.0
      %604 = vmatpush1.msra.mxu0 0.0
      %605 = vmatprep.subr.mxu0 0.0
      %606 = vmatpush1.msra.mxu0 0.0
      %607 = vmatprep.subr.mxu0 0.0
      %608 = vmatpush1.msra.mxu0 0.0
      %609 = vmatprep.subr.mxu0 0.0
      %610 = vmatpush1.msra.mxu0 0.0
      %611 = vmatprep.subr.mxu0 0.0
      %612 = vmatpush1.msra.mxu0 0.0
      %613 = vmatprep.subr.mxu0 0.0
      %614 = vmatpush1.msra.mxu0 0.0
      %615 = vmatprep.subr.mxu0 0.0
      %616 = vmatpush1.msra.mxu0 0.0
      %617 = vmatprep.subr.mxu0 0.0
      %618 = vmatpush1.msra.mxu0 0.0
      %619 = vmatprep.subr.mxu0 0.0
      %620 = vmatpush1.msra.mxu0 0.0
      %621 = vmatprep.subr.mxu0 0.0
      %622 = vmatpush1.msra.mxu0 0.0
      %623 = vmatprep.subr.mxu0 0.0
      %624 = vmatpush1.msra.mxu0 0.0
      %625 = vmatprep.subr.mxu0 0.0
      %626 = vmatpush1.msra.mxu0 0.0
      %627 = vmatprep.subr.mxu0 0.0
      %628 = vmatpush1.msra.mxu0 0.0
      %629 = vmatprep.subr.mxu0 0.0
      %630 = vmatpush1.msra.mxu0 0.0
      %631 = vmatprep.subr.mxu0 0.0
      %632 = vmatpush1.msra.mxu0 0.0
      %633 = vmatprep.subr.mxu0 0.0
      %634 = vmatpush1.msra.mxu0 0.0
      %635 = vmatprep.subr.mxu0 0.0
      %636 = vmatpush1.msra.mxu0 0.0
      %637 = vmatprep.subr.mxu0 0.0
      %638 = vmatpush1.msra.mxu0 0.0
      %639 = vmatprep.subr.mxu0 0.0
      %640 = vmatpush1.msra.mxu0 0.0
      %641 = vmatprep.subr.mxu0 0.0
      %642 = vmatpush1.msra.mxu0 0.0
      %643 = vmatprep.subr.mxu0 0.0
      %644 = vmatpush1.msra.mxu0 0.0
      %645 = vmatprep.subr.mxu0 0.0
      %646 = vmatpush1.msra.mxu0 0.0
      %647 = vmatprep.subr.mxu0 0.0
      %648 = vmatpush1.msra.mxu0 0.0
      %649 = vmatprep.subr.mxu0 0.0
      %650 = vmatpush1.msra.mxu0 0.0
      %651 = vmatprep.mubr.f32.mxu0 0.0
      %652 = vmatmul.mubr.f32.gmra.mrb[0].mxu0 %v579
      %v653 = vpop.f32.mrb[0].mxu0
      %v654 = vadd.f32 0.0, %v653
      %v655 = vpop.f32.mrb[0].mxu0
      %v656 = vadd.f32 0.0, %v655
      %657 = vdwg.mxu0
      %658 = vmatprep.subr.mxu0 0.0
      %659 = vmatpush1.msra.mxu0 %v585
      %660 = vmatprep.subr.mxu0 0.0
      %661 = vmatpush1.msra.mxu0 0.0
      %662 = vmatprep.subr.mxu0 0.0
      %663 = vmatpush1.msra.mxu0 0.0
      %664 = vmatprep.subr.mxu0 0.0
      %665 = vmatpush1.msra.mxu0 0.0
      %666 = vmatprep.subr.mxu0 0.0
      %667 = vmatpush1.msra.mxu0 0.0
      %668 = vmatprep.subr.mxu0 0.0
      %669 = vmatpush1.msra.mxu0 0.0
      %670 = vmatprep.subr.mxu0 0.0
      %671 = vmatpush1.msra.mxu0 0.0
      %672 = vmatprep.subr.mxu0 0.0
      %673 = vmatpush1.msra.mxu0 0.0
      %674 = vmatprep.subr.mxu0 0.0
      %675 = vmatpush1.msra.mxu0 0.0
      %676 = vmatprep.subr.mxu0 0.0
      %677 = vmatpush1.msra.mxu0 0.0
      %678 = vmatprep.subr.mxu0 0.0
      %679 = vmatpush1.msra.mxu0 0.0
      %680 = vmatprep.subr.mxu0 0.0
      %681 = vmatpush1.msra.mxu0 0.0
      %682 = vmatprep.subr.mxu0 0.0
      %683 = vmatpush1.msra.mxu0 0.0
      %684 = vmatprep.subr.mxu0 0.0
      %685 = vmatpush1.msra.mxu0 0.0
      %686 = vmatprep.subr.mxu0 0.0
      %687 = vmatpush1.msra.mxu0 0.0
      %688 = vmatprep.subr.mxu0 0.0
      %689 = vmatpush1.msra.mxu0 0.0
      %690 = vmatprep.subr.mxu0 0.0
      %691 = vmatpush1.msra.mxu0 0.0
      %692 = vmatprep.subr.mxu0 0.0
      %693 = vmatpush1.msra.mxu0 0.0
      %694 = vmatprep.subr.mxu0 0.0
      %695 = vmatpush1.msra.mxu0 0.0
      %696 = vmatprep.subr.mxu0 0.0
      %697 = vmatpush1.msra.mxu0 0.0
      %698 = vmatprep.subr.mxu0 0.0
      %699 = vmatpush1.msra.mxu0 0.0
      %700 = vmatprep.subr.mxu0 0.0
      %701 = vmatpush1.msra.mxu0 0.0
      %702 = vmatprep.subr.mxu0 0.0
      %703 = vmatpush1.msra.mxu0 0.0
      %704 = vmatprep.subr.mxu0 0.0
      %705 = vmatpush1.msra.mxu0 0.0
      %706 = vmatprep.subr.mxu0 0.0
      %707 = vmatpush1.msra.mxu0 0.0
      %708 = vmatprep.subr.mxu0 0.0
      %709 = vmatpush1.msra.mxu0 0.0
      %710 = vmatprep.subr.mxu0 0.0
      %711 = vmatpush1.msra.mxu0 0.0
      %712 = vmatprep.subr.mxu0 0.0
      %713 = vmatpush1.msra.mxu0 0.0
      %714 = vmatprep.subr.mxu0 0.0
      %715 = vmatpush1.msra.mxu0 0.0
      %716 = vmatprep.subr.mxu0 0.0
      %717 = vmatpush1.msra.mxu0 0.0
      %718 = vmatprep.subr.mxu0 0.0
      %719 = vmatpush1.msra.mxu0 0.0
      %720 = vmatprep.subr.mxu0 0.0
      %721 = vmatpush1.msra.mxu0 0.0
      %722 = vmatprep.mubr.f32.mxu0 0.0
      %723 = vmatmul.mubr.f32.gmra.mrb[0].mxu0 %v579
      %v724 = vpop.f32.mrb[0].mxu0
      %v725 = vadd.f32 0.0, %v724
      %v726 = vpop.f32.mrb[0].mxu0
      %727 = vdwg.mxu0
      %v728 = vadd.f32 %v493, %v654
      %v729 = vadd.f32 %v495, %v656
      %v730 = vadd.f32 %v564, %v725
      %s731 = scalar_lea.vmem %s1, 24
      %v732 = vld [vmem:[%s731] sm:$0xff]
      %733 = vrot.lane.b32.xlu0 %v248, 110
      %v734 = vpop.permute.xlu0 %733
      %735 = vrot.lane.b32.xlu0 %v255, 110
      %v736 = vpop.permute.xlu0 %735
      %737 = vrot.lane.b32.xlu0 %v249, 110
      %v738 = vpop.permute.xlu0 %737
      %vm739 = vcmask 900096
      %v740 = vsel %vm739, %v734, %v736
      %v741 = vsel %vm739, %v736, %v738
      %v743 = vsel %vm265, %v732, 0
      %v745 = vsel %vm269, %v740, 0
      %v747 = vsel %vm269, %v741, 0
      %v749 = vsel %vm269, %v738, 0
      %751 = vmatprep.subr.mxu0 %v747
      %752 = vmatpush1.msra.mxu0 %v745
      %753 = vmatprep.subr.mxu0 0.0
      %754 = vmatpush1.msra.mxu0 0.0
      %755 = vmatprep.subr.mxu0 0.0
      %756 = vmatpush1.msra.mxu0 0.0
      %757 = vmatprep.subr.mxu0 0.0
      %758 = vmatpush1.msra.mxu0 0.0
      %759 = vmatprep.subr.mxu0 0.0
      %760 = vmatpush1.msra.mxu0 0.0
      %761 = vmatprep.subr.mxu0 0.0
      %762 = vmatpush1.msra.mxu0 0.0
      %763 = vmatprep.subr.mxu0 0.0
      %764 = vmatpush1.msra.mxu0 0.0
      %765 = vmatprep.subr.mxu0 0.0
      %766 = vmatpush1.msra.mxu0 0.0
      %767 = vmatprep.subr.mxu0 0.0
      %768 = vmatpush1.msra.mxu0 0.0
      %769 = vmatprep.subr.mxu0 0.0
      %770 = vmatpush1.msra.mxu0 0.0
      %771 = vmatprep.subr.mxu0 0.0
      %772 = vmatpush1.msra.mxu0 0.0
      %773 = vmatprep.subr.mxu0 0.0
      %774 = vmatpush1.msra.mxu0 0.0
      %775 = vmatprep.subr.mxu0 0.0
      %776 = vmatpush1.msra.mxu0 0.0
      %777 = vmatprep.subr.mxu0 0.0
      %778 = vmatpush1.msra.mxu0 0.0
      %779 = vmatprep.subr.mxu0 0.0
      %780 = vmatpush1.msra.mxu0 0.0
      %781 = vmatprep.subr.mxu0 0.0
      %782 = vmatpush1.msra.mxu0 0.0
      %783 = vmatprep.subr.mxu0 0.0
      %784 = vmatpush1.msra.mxu0 0.0
      %785 = vmatprep.subr.mxu0 0.0
      %786 = vmatpush1.msra.mxu0 0.0
      %787 = vmatprep.subr.mxu0 0.0
      %788 = vmatpush1.msra.mxu0 0.0
      %789 = vmatprep.subr.mxu0 0.0
      %790 = vmatpush1.msra.mxu0 0.0
      %791 = vmatprep.subr.mxu0 0.0
      %792 = vmatpush1.msra.mxu0 0.0
      %793 = vmatprep.subr.mxu0 0.0
      %794 = vmatpush1.msra.mxu0 0.0
      %795 = vmatprep.subr.mxu0 0.0
      %796 = vmatpush1.msra.mxu0 0.0
      %797 = vmatprep.subr.mxu0 0.0
      %798 = vmatpush1.msra.mxu0 0.0
      %799 = vmatprep.subr.mxu0 0.0
      %800 = vmatpush1.msra.mxu0 0.0
      %801 = vmatprep.subr.mxu0 0.0
      %802 = vmatpush1.msra.mxu0 0.0
      %803 = vmatprep.subr.mxu0 0.0
      %804 = vmatpush1.msra.mxu0 0.0
      %805 = vmatprep.subr.mxu0 0.0
      %806 = vmatpush1.msra.mxu0 0.0
      %807 = vmatprep.subr.mxu0 0.0
      %808 = vmatpush1.msra.mxu0 0.0
      %809 = vmatprep.subr.mxu0 0.0
      %810 = vmatpush1.msra.mxu0 0.0
      %811 = vmatprep.subr.mxu0 0.0
      %812 = vmatpush1.msra.mxu0 0.0
      %813 = vmatprep.subr.mxu0 0.0
      %814 = vmatpush1.msra.mxu0 0.0
      %815 = vmatprep.mubr.f32.mxu0 0.0
      %816 = vmatmul.mubr.f32.gmra.mrb[0].mxu0 %v743
      %v817 = vpop.f32.mrb[0].mxu0
      %v818 = vadd.f32 0.0, %v817
      %v819 = vpop.f32.mrb[0].mxu0
      %v820 = vadd.f32 0.0, %v819
      %821 = vdwg.mxu0
      %822 = vmatprep.subr.mxu0 0.0
      %823 = vmatpush1.msra.mxu0 %v749
      %824 = vmatprep.subr.mxu0 0.0
      %825 = vmatpush1.msra.mxu0 0.0
      %826 = vmatprep.subr.mxu0 0.0
      %827 = vmatpush1.msra.mxu0 0.0
      %828 = vmatprep.subr.mxu0 0.0
      %829 = vmatpush1.msra.mxu0 0.0
      %830 = vmatprep.subr.mxu0 0.0
      %831 = vmatpush1.msra.mxu0 0.0
      %832 = vmatprep.subr.mxu0 0.0
      %833 = vmatpush1.msra.mxu0 0.0
      %834 = vmatprep.subr.mxu0 0.0
      %835 = vmatpush1.msra.mxu0 0.0
      %836 = vmatprep.subr.mxu0 0.0
      %837 = vmatpush1.msra.mxu0 0.0
      %838 = vmatprep.subr.mxu0 0.0
      %839 = vmatpush1.msra.mxu0 0.0
      %840 = vmatprep.subr.mxu0 0.0
      %841 = vmatpush1.msra.mxu0 0.0
      %842 = vmatprep.subr.mxu0 0.0
      %843 = vmatpush1.msra.mxu0 0.0
      %844 = vmatprep.subr.mxu0 0.0
      %845 = vmatpush1.msra.mxu0 0.0
      %846 = vmatprep.subr.mxu0 0.0
      %847 = vmatpush1.msra.mxu0 0.0
      %848 = vmatprep.subr.mxu0 0.0
      %849 = vmatpush1.msra.mxu0 0.0
      %850 = vmatprep.subr.mxu0 0.0
      %851 = vmatpush1.msra.mxu0 0.0
      %852 = vmatprep.subr.mxu0 0.0
      %853 = vmatpush1.msra.mxu0 0.0
      %854 = vmatprep.subr.mxu0 0.0
      %855 = vmatpush1.msra.mxu0 0.0
      %856 = vmatprep.subr.mxu0 0.0
      %857 = vmatpush1.msra.mxu0 0.0
      %858 = vmatprep.subr.mxu0 0.0
      %859 = vmatpush1.msra.mxu0 0.0
      %860 = vmatprep.subr.mxu0 0.0
      %861 = vmatpush1.msra.mxu0 0.0
      %862 = vmatprep.subr.mxu0 0.0
      %863 = vmatpush1.msra.mxu0 0.0
      %864 = vmatprep.subr.mxu0 0.0
      %865 = vmatpush1.msra.mxu0 0.0
      %866 = vmatprep.subr.mxu0 0.0
      %867 = vmatpush1.msra.mxu0 0.0
      %868 = vmatprep.subr.mxu0 0.0
      %869 = vmatpush1.msra.mxu0 0.0
      %870 = vmatprep.subr.mxu0 0.0
      %871 = vmatpush1.msra.mxu0 0.0
      %872 = vmatprep.subr.mxu0 0.0
      %873 = vmatpush1.msra.mxu0 0.0
      %874 = vmatprep.subr.mxu0 0.0
      %875 = vmatpush1.msra.mxu0 0.0
      %876 = vmatprep.subr.mxu0 0.0
      %877 = vmatpush1.msra.mxu0 0.0
      %878 = vmatprep.subr.mxu0 0.0
      %879 = vmatpush1.msra.mxu0 0.0
      %880 = vmatprep.subr.mxu0 0.0
      %881 = vmatpush1.msra.mxu0 0.0
      %882 = vmatprep.subr.mxu0 0.0
      %883 = vmatpush1.msra.mxu0 0.0
      %884 = vmatprep.subr.mxu0 0.0
      %885 = vmatpush1.msra.mxu0 0.0
      %886 = vmatprep.mubr.f32.mxu0 0.0
      %887 = vmatmul.mubr.f32.gmra.mrb[0].mxu0 %v743
      %v888 = vpop.f32.mrb[0].mxu0
      %v889 = vadd.f32 0.0, %v888
      %v890 = vpop.f32.mrb[0].mxu0
      %891 = vdwg.mxu0
      %v892 = vadd.f32 %v728, %v818
      %v893 = vadd.f32 %v729, %v820
      %v894 = vadd.f32 %v730, %v889
      %s895 = scalar_lea.vmem %s1, 32
      %v896 = vld [vmem:[%s895] sm:$0xff]
      %897 = vrot.lane.b32.xlu0 %v248, 109
      %v898 = vpop.permute.xlu0 %897
      %899 = vrot.lane.b32.xlu0 %v255, 109
      %v900 = vpop.permute.xlu0 %899
      %901 = vrot.lane.b32.xlu0 %v249, 109
      %v902 = vpop.permute.xlu0 %901
      %vm903 = vcmask 891904
      %v904 = vsel %vm903, %v898, %v900
      %v905 = vsel %vm903, %v900, %v902
      %v907 = vsel %vm265, %v896, 0
      %v909 = vsel %vm269, %v904, 0
      %v911 = vsel %vm269, %v905, 0
      %v913 = vsel %vm269, %v902, 0
      %915 = vmatprep.subr.mxu0 %v911
      %916 = vmatpush1.msra.mxu0 %v909
      %917 = vmatprep.subr.mxu0 0.0
      %918 = vmatpush1.msra.mxu0 0.0
      %919 = vmatprep.subr.mxu0 0.0
      %920 = vmatpush1.msra.mxu0 0.0
      %921 = vmatprep.subr.mxu0 0.0
      %922 = vmatpush1.msra.mxu0 0.0
      %923 = vmatprep.subr.mxu0 0.0
      %924 = vmatpush1.msra.mxu0 0.0
      %925 = vmatprep.subr.mxu0 0.0
      %926 = vmatpush1.msra.mxu0 0.0
      %927 = vmatprep.subr.mxu0 0.0
      %928 = vmatpush1.msra.mxu0 0.0
      %929 = vmatprep.subr.mxu0 0.0
      %930 = vmatpush1.msra.mxu0 0.0
      %931 = vmatprep.subr.mxu0 0.0
      %932 = vmatpush1.msra.mxu0 0.0
      %933 = vmatprep.subr.mxu0 0.0
      %934 = vmatpush1.msra.mxu0 0.0
      %935 = vmatprep.subr.mxu0 0.0
      %936 = vmatpush1.msra.mxu0 0.0
      %937 = vmatprep.subr.mxu0 0.0
      %938 = vmatpush1.msra.mxu0 0.0
      %939 = vmatprep.subr.mxu0 0.0
      %940 = vmatpush1.msra.mxu0 0.0
      %941 = vmatprep.subr.mxu0 0.0
      %942 = vmatpush1.msra.mxu0 0.0
      %943 = vmatprep.subr.mxu0 0.0
      %944 = vmatpush1.msra.mxu0 0.0
      %945 = vmatprep.subr.mxu0 0.0
      %946 = vmatpush1.msra.mxu0 0.0
      %947 = vmatprep.subr.mxu0 0.0
      %948 = vmatpush1.msra.mxu0 0.0
      %949 = vmatprep.subr.mxu0 0.0
      %950 = vmatpush1.msra.mxu0 0.0
      %951 = vmatprep.subr.mxu0 0.0
      %952 = vmatpush1.msra.mxu0 0.0
      %953 = vmatprep.subr.mxu0 0.0
      %954 = vmatpush1.msra.mxu0 0.0
      %955 = vmatprep.subr.mxu0 0.0
      %956 = vmatpush1.msra.mxu0 0.0
      %957 = vmatprep.subr.mxu0 0.0
      %958 = vmatpush1.msra.mxu0 0.0
      %959 = vmatprep.subr.mxu0 0.0
      %960 = vmatpush1.msra.mxu0 0.0
      %961 = vmatprep.subr.mxu0 0.0
      %962 = vmatpush1.msra.mxu0 0.0
      %963 = vmatprep.subr.mxu0 0.0
      %964 = vmatpush1.msra.mxu0 0.0
      %965 = vmatprep.subr.mxu0 0.0
      %966 = vmatpush1.msra.mxu0 0.0
      %967 = vmatprep.subr.mxu0 0.0
      %968 = vmatpush1.msra.mxu0 0.0
      %969 = vmatprep.subr.mxu0 0.0
      %970 = vmatpush1.msra.mxu0 0.0
      %971 = vmatprep.subr.mxu0 0.0
      %972 = vmatpush1.msra.mxu0 0.0
      %973 = vmatprep.subr.mxu0 0.0
      %974 = vmatpush1.msra.mxu0 0.0
      %975 = vmatprep.subr.mxu0 0.0
      %976 = vmatpush1.msra.mxu0 0.0
      %977 = vmatprep.subr.mxu0 0.0
      %978 = vmatpush1.msra.mxu0 0.0
      %979 = vmatprep.mubr.f32.mxu0 0.0
      %980 = vmatmul.mubr.f32.gmra.mrb[0].mxu0 %v907
      %v981 = vpop.f32.mrb[0].mxu0
      %v982 = vadd.f32 0.0, %v981
      %v983 = vpop.f32.mrb[0].mxu0
      %v984 = vadd.f32 0.0, %v983
      %985 = vdwg.mxu0
      %986 = vmatprep.subr.mxu0 0.0
      %987 = vmatpush1.msra.mxu0 %v913
      %988 = vmatprep.subr.mxu0 0.0
      %989 = vmatpush1.msra.mxu0 0.0
      %990 = vmatprep.subr.mxu0 0.0
      %991 = vmatpush1.msra.mxu0 0.0
      %992 = vmatprep.subr.mxu0 0.0
      %993 = vmatpush1.msra.mxu0 0.0
      %994 = vmatprep.subr.mxu0 0.0
      %995 = vmatpush1.msra.mxu0 0.0
      %996 = vmatprep.subr.mxu0 0.0
      %997 = vmatpush1.msra.mxu0 0.0
      %998 = vmatprep.subr.mxu0 0.0
      %999 = vmatpush1.msra.mxu0 0.0
      %1000 = vmatprep.subr.mxu0 0.0
      %1001 = vmatpush1.msra.mxu0 0.0
      %1002 = vmatprep.subr.mxu0 0.0
      %1003 = vmatpush1.msra.mxu0 0.0
      %1004 = vmatprep.subr.mxu0 0.0
      %1005 = vmatpush1.msra.mxu0 0.0
      %1006 = vmatprep.subr.mxu0 0.0
      %1007 = vmatpush1.msra.mxu0 0.0
      %1008 = vmatprep.subr.mxu0 0.0
      %1009 = vmatpush1.msra.mxu0 0.0
      %1010 = vmatprep.subr.mxu0 0.0
      %1011 = vmatpush1.msra.mxu0 0.0
      %1012 = vmatprep.subr.mxu0 0.0
      %1013 = vmatpush1.msra.mxu0 0.0
      %1014 = vmatprep.subr.mxu0 0.0
      %1015 = vmatpush1.msra.mxu0 0.0
      %1016 = vmatprep.subr.mxu0 0.0
      %1017 = vmatpush1.msra.mxu0 0.0
      %1018 = vmatprep.subr.mxu0 0.0
      %1019 = vmatpush1.msra.mxu0 0.0
      %1020 = vmatprep.subr.mxu0 0.0
      %1021 = vmatpush1.msra.mxu0 0.0
      %1022 = vmatprep.subr.mxu0 0.0
      %1023 = vmatpush1.msra.mxu0 0.0
      %1024 = vmatprep.subr.mxu0 0.0
      %1025 = vmatpush1.msra.mxu0 0.0
      %1026 = vmatprep.subr.mxu0 0.0
      %1027 = vmatpush1.msra.mxu0 0.0
      %1028 = vmatprep.subr.mxu0 0.0
      %1029 = vmatpush1.msra.mxu0 0.0
      %1030 = vmatprep.subr.mxu0 0.0
      %1031 = vmatpush1.msra.mxu0 0.0
      %1032 = vmatprep.subr.mxu0 0.0
      %1033 = vmatpush1.msra.mxu0 0.0
      %1034 = vmatprep.subr.mxu0 0.0
      %1035 = vmatpush1.msra.mxu0 0.0
      %1036 = vmatprep.subr.mxu0 0.0
      %1037 = vmatpush1.msra.mxu0 0.0
      %1038 = vmatprep.subr.mxu0 0.0
      %1039 = vmatpush1.msra.mxu0 0.0
      %1040 = vmatprep.subr.mxu0 0.0
      %1041 = vmatpush1.msra.mxu0 0.0
      %1042 = vmatprep.subr.mxu0 0.0
      %1043 = vmatpush1.msra.mxu0 0.0
      %1044 = vmatprep.subr.mxu0 0.0
      %1045 = vmatpush1.msra.mxu0 0.0
      %1046 = vmatprep.subr.mxu0 0.0
      %1047 = vmatpush1.msra.mxu0 0.0
      %1048 = vmatprep.subr.mxu0 0.0
      %1049 = vmatpush1.msra.mxu0 0.0
      %1050 = vmatprep.mubr.f32.mxu0 0.0
      %1051 = vmatmul.mubr.f32.gmra.mrb[0].mxu0 %v907
      %v1052 = vpop.f32.mrb[0].mxu0
      %v1053 = vadd.f32 0.0, %v1052
      %v1054 = vpop.f32.mrb[0].mxu0
      %1055 = vdwg.mxu0
      %v1056 = vadd.f32 %v892, %v982
      %v1057 = vadd.f32 %v893, %v984
      %v1058 = vadd.f32 %v894, %v1053
      %s1059 = scalar_lea.vmem %s1, 40
      %v1060 = vld [vmem:[%s1059] sm:$0xff]
      %1061 = vrot.lane.b32.xlu0 %v248, 108
      %v1062 = vpop.permute.xlu0 %1061
      %1063 = vrot.lane.b32.xlu0 %v255, 108
      %v1064 = vpop.permute.xlu0 %1063
      %1065 = vrot.lane.b32.xlu0 %v249, 108
      %v1066 = vpop.permute.xlu0 %1065
      %vm1067 = vcmask 883712
      %v1068 = vsel %vm1067, %v1062, %v1064
      %v1069 = vsel %vm1067, %v1064, %v1066
      %v1071 = vsel %vm265, %v1060, 0
      %v1073 = vsel %vm269, %v1068, 0
      %v1075 = vsel %vm269, %v1069, 0
      %v1077 = vsel %vm269, %v1066, 0
      %1079 = vmatprep.subr.mxu0 %v1075
      %1080 = vmatpush1.msra.mxu0 %v1073
      %1081 = vmatprep.subr.mxu0 0.0
      %1082 = vmatpush1.msra.mxu0 0.0
      %1083 = vmatprep.subr.mxu0 0.0
      %1084 = vmatpush1.msra.mxu0 0.0
      %1085 = vmatprep.subr.mxu0 0.0
      %1086 = vmatpush1.msra.mxu0 0.0
      %1087 = vmatprep.subr.mxu0 0.0
      %1088 = vmatpush1.msra.mxu0 0.0
      %1089 = vmatprep.subr.mxu0 0.0
      %1090 = vmatpush1.msra.mxu0 0.0
      %1091 = vmatprep.subr.mxu0 0.0
      %1092 = vmatpush1.msra.mxu0 0.0
      %1093 = vmatprep.subr.mxu0 0.0
      %1094 = vmatpush1.msra.mxu0 0.0
      %1095 = vmatprep.subr.mxu0 0.0
      %1096 = vmatpush1.msra.mxu0 0.0
      %1097 = vmatprep.subr.mxu0 0.0
      %1098 = vmatpush1.msra.mxu0 0.0
      %1099 = vmatprep.subr.mxu0 0.0
      %1100 = vmatpush1.msra.mxu0 0.0
      %1101 = vmatprep.subr.mxu0 0.0
      %1102 = vmatpush1.msra.mxu0 0.0
      %1103 = vmatprep.subr.mxu0 0.0
      %1104 = vmatpush1.msra.mxu0 0.0
      %1105 = vmatprep.subr.mxu0 0.0
      %1106 = vmatpush1.msra.mxu0 0.0
      %1107 = vmatprep.subr.mxu0 0.0
      %1108 = vmatpush1.msra.mxu0 0.0
      %1109 = vmatprep.subr.mxu0 0.0
      %1110 = vmatpush1.msra.mxu0 0.0
      %1111 = vmatprep.subr.mxu0 0.0
      %1112 = vmatpush1.msra.mxu0 0.0
      %1113 = vmatprep.subr.mxu0 0.0
      %1114 = vmatpush1.msra.mxu0 0.0
      %1115 = vmatprep.subr.mxu0 0.0
      %1116 = vmatpush1.msra.mxu0 0.0
      %1117 = vmatprep.subr.mxu0 0.0
      %1118 = vmatpush1.msra.mxu0 0.0
      %1119 = vmatprep.subr.mxu0 0.0
      %1120 = vmatpush1.msra.mxu0 0.0
      %1121 = vmatprep.subr.mxu0 0.0
      %1122 = vmatpush1.msra.mxu0 0.0
      %1123 = vmatprep.subr.mxu0 0.0
      %1124 = vmatpush1.msra.mxu0 0.0
      %1125 = vmatprep.subr.mxu0 0.0
      %1126 = vmatpush1.msra.mxu0 0.0
      %1127 = vmatprep.subr.mxu0 0.0
      %1128 = vmatpush1.msra.mxu0 0.0
      %1129 = vmatprep.subr.mxu0 0.0
      %1130 = vmatpush1.msra.mxu0 0.0
      %1131 = vmatprep.subr.mxu0 0.0
      %1132 = vmatpush1.msra.mxu0 0.0
      %1133 = vmatprep.subr.mxu0 0.0
      %1134 = vmatpush1.msra.mxu0 0.0
      %1135 = vmatprep.subr.mxu0 0.0
      %1136 = vmatpush1.msra.mxu0 0.0
      %1137 = vmatprep.subr.mxu0 0.0
      %1138 = vmatpush1.msra.mxu0 0.0
      %1139 = vmatprep.subr.mxu0 0.0
      %1140 = vmatpush1.msra.mxu0 0.0
      %1141 = vmatprep.subr.mxu0 0.0
      %1142 = vmatpush1.msra.mxu0 0.0
      %1143 = vmatprep.mubr.f32.mxu0 0.0
      %1144 = vmatmul.mubr.f32.gmra.mrb[0].mxu0 %v1071
      %v1145 = vpop.f32.mrb[0].mxu0
      %v1146 = vadd.f32 0.0, %v1145
      %v1147 = vpop.f32.mrb[0].mxu0
      %v1148 = vadd.f32 0.0, %v1147
      %1149 = vdwg.mxu0
      %1150 = vmatprep.subr.mxu0 0.0
      %1151 = vmatpush1.msra.mxu0 %v1077
      %1152 = vmatprep.subr.mxu0 0.0
      %1153 = vmatpush1.msra.mxu0 0.0
      %1154 = vmatprep.subr.mxu0 0.0
      %1155 = vmatpush1.msra.mxu0 0.0
      %1156 = vmatprep.subr.mxu0 0.0
      %1157 = vmatpush1.msra.mxu0 0.0
      %1158 = vmatprep.subr.mxu0 0.0
      %1159 = vmatpush1.msra.mxu0 0.0
      %1160 = vmatprep.subr.mxu0 0.0
      %1161 = vmatpush1.msra.mxu0 0.0
      %1162 = vmatprep.subr.mxu0 0.0
      %1163 = vmatpush1.msra.mxu0 0.0
      %1164 = vmatprep.subr.mxu0 0.0
      %1165 = vmatpush1.msra.mxu0 0.0
      %1166 = vmatprep.subr.mxu0 0.0
      %1167 = vmatpush1.msra.mxu0 0.0
      %1168 = vmatprep.subr.mxu0 0.0
      %1169 = vmatpush1.msra.mxu0 0.0
      %1170 = vmatprep.subr.mxu0 0.0
      %1171 = vmatpush1.msra.mxu0 0.0
      %1172 = vmatprep.subr.mxu0 0.0
      %1173 = vmatpush1.msra.mxu0 0.0
      %1174 = vmatprep.subr.mxu0 0.0
      %1175 = vmatpush1.msra.mxu0 0.0
      %1176 = vmatprep.subr.mxu0 0.0
      %1177 = vmatpush1.msra.mxu0 0.0
      %1178 = vmatprep.subr.mxu0 0.0
      %1179 = vmatpush1.msra.mxu0 0.0
      %1180 = vmatprep.subr.mxu0 0.0
      %1181 = vmatpush1.msra.mxu0 0.0
      %1182 = vmatprep.subr.mxu0 0.0
      %1183 = vmatpush1.msra.mxu0 0.0
      %1184 = vmatprep.subr.mxu0 0.0
      %1185 = vmatpush1.msra.mxu0 0.0
      %1186 = vmatprep.subr.mxu0 0.0
      %1187 = vmatpush1.msra.mxu0 0.0
      %1188 = vmatprep.subr.mxu0 0.0
      %1189 = vmatpush1.msra.mxu0 0.0
      %1190 = vmatprep.subr.mxu0 0.0
      %1191 = vmatpush1.msra.mxu0 0.0
      %1192 = vmatprep.subr.mxu0 0.0
      %1193 = vmatpush1.msra.mxu0 0.0
      %1194 = vmatprep.subr.mxu0 0.0
      %1195 = vmatpush1.msra.mxu0 0.0
      %1196 = vmatprep.subr.mxu0 0.0
      %1197 = vmatpush1.msra.mxu0 0.0
      %1198 = vmatprep.subr.mxu0 0.0
      %1199 = vmatpush1.msra.mxu0 0.0
      %1200 = vmatprep.subr.mxu0 0.0
      %1201 = vmatpush1.msra.mxu0 0.0
      %1202 = vmatprep.subr.mxu0 0.0
      %1203 = vmatpush1.msra.mxu0 0.0
      %1204 = vmatprep.subr.mxu0 0.0
      %1205 = vmatpush1.msra.mxu0 0.0
      %1206 = vmatprep.subr.mxu0 0.0
      %1207 = vmatpush1.msra.mxu0 0.0
      %1208 = vmatprep.subr.mxu0 0.0
      %1209 = vmatpush1.msra.mxu0 0.0
      %1210 = vmatprep.subr.mxu0 0.0
      %1211 = vmatpush1.msra.mxu0 0.0
      %1212 = vmatprep.subr.mxu0 0.0
      %1213 = vmatpush1.msra.mxu0 0.0
      %1214 = vmatprep.mubr.f32.mxu0 0.0
      %1215 = vmatmul.mubr.f32.gmra.mrb[0].mxu0 %v1071
      %v1216 = vpop.f32.mrb[0].mxu0
      %v1217 = vadd.f32 0.0, %v1216
      %v1218 = vpop.f32.mrb[0].mxu0
      %1219 = vdwg.mxu0
      %v1220 = vadd.f32 %v1056, %v1146
      %v1221 = vadd.f32 %v1057, %v1148
      %v1222 = vadd.f32 %v1058, %v1217
      %s1223 = scalar_lea.vmem %s1, 48
      %v1224 = vld [vmem:[%s1223] sm:$0xff]
      %1225 = vrot.lane.b32.xlu0 %v248, 92
      %v1226 = vpop.permute.xlu0 %1225
      %1227 = vrot.lane.b32.xlu0 %v255, 92
      %v1228 = vpop.permute.xlu0 %1227
      %1229 = vrot.lane.b32.xlu0 %v249, 92
      %v1230 = vpop.permute.xlu0 %1229
      %vm1231 = vcmask 752640
      %v1232 = vsel %vm1231, %v1226, %v1228
      %v1233 = vsel %vm1231, %v1228, %v1230
      %v1235 = vsel %vm265, %v1224, 0
      %v1237 = vsel %vm269, %v1232, 0
      %v1239 = vsel %vm269, %v1233, 0
      %v1241 = vsel %vm269, %v1230, 0
      %1243 = vmatprep.subr.mxu0 %v1239
      %1244 = vmatpush1.msra.mxu0 %v1237
      %1245 = vmatprep.subr.mxu0 0.0
      %1246 = vmatpush1.msra.mxu0 0.0
      %1247 = vmatprep.subr.mxu0 0.0
      %1248 = vmatpush1.msra.mxu0 0.0
      %1249 = vmatprep.subr.mxu0 0.0
      %1250 = vmatpush1.msra.mxu0 0.0
      %1251 = vmatprep.subr.mxu0 0.0
      %1252 = vmatpush1.msra.mxu0 0.0
      %1253 = vmatprep.subr.mxu0 0.0
      %1254 = vmatpush1.msra.mxu0 0.0
      %1255 = vmatprep.subr.mxu0 0.0
      %1256 = vmatpush1.msra.mxu0 0.0
      %1257 = vmatprep.subr.mxu0 0.0
      %1258 = vmatpush1.msra.mxu0 0.0
      %1259 = vmatprep.subr.mxu0 0.0
      %1260 = vmatpush1.msra.mxu0 0.0
      %1261 = vmatprep.subr.mxu0 0.0
      %1262 = vmatpush1.msra.mxu0 0.0
      %1263 = vmatprep.subr.mxu0 0.0
      %1264 = vmatpush1.msra.mxu0 0.0
      %1265 = vmatprep.subr.mxu0 0.0
      %1266 = vmatpush1.msra.mxu0 0.0
      %1267 = vmatprep.subr.mxu0 0.0
      %1268 = vmatpush1.msra.mxu0 0.0
      %1269 = vmatprep.subr.mxu0 0.0
      %1270 = vmatpush1.msra.mxu0 0.0
      %1271 = vmatprep.subr.mxu0 0.0
      %1272 = vmatpush1.msra.mxu0 0.0
      %1273 = vmatprep.subr.mxu0 0.0
      %1274 = vmatpush1.msra.mxu0 0.0
      %1275 = vmatprep.subr.mxu0 0.0
      %1276 = vmatpush1.msra.mxu0 0.0
      %1277 = vmatprep.subr.mxu0 0.0
      %1278 = vmatpush1.msra.mxu0 0.0
      %1279 = vmatprep.subr.mxu0 0.0
      %1280 = vmatpush1.msra.mxu0 0.0
      %1281 = vmatprep.subr.mxu0 0.0
      %1282 = vmatpush1.msra.mxu0 0.0
      %1283 = vmatprep.subr.mxu0 0.0
      %1284 = vmatpush1.msra.mxu0 0.0
      %1285 = vmatprep.subr.mxu0 0.0
      %1286 = vmatpush1.msra.mxu0 0.0
      %1287 = vmatprep.subr.mxu0 0.0
      %1288 = vmatpush1.msra.mxu0 0.0
      %1289 = vmatprep.subr.mxu0 0.0
      %1290 = vmatpush1.msra.mxu0 0.0
      %1291 = vmatprep.subr.mxu0 0.0
      %1292 = vmatpush1.msra.mxu0 0.0
      %1293 = vmatprep.subr.mxu0 0.0
      %1294 = vmatpush1.msra.mxu0 0.0
      %1295 = vmatprep.subr.mxu0 0.0
      %1296 = vmatpush1.msra.mxu0 0.0
      %1297 = vmatprep.subr.mxu0 0.0
      %1298 = vmatpush1.msra.mxu0 0.0
      %1299 = vmatprep.subr.mxu0 0.0
      %1300 = vmatpush1.msra.mxu0 0.0
      %1301 = vmatprep.subr.mxu0 0.0
      %1302 = vmatpush1.msra.mxu0 0.0
      %1303 = vmatprep.subr.mxu0 0.0
      %1304 = vmatpush1.msra.mxu0 0.0
      %1305 = vmatprep.subr.mxu0 0.0
      %1306 = vmatpush1.msra.mxu0 0.0
      %1307 = vmatprep.mubr.f32.mxu0 0.0
      %1308 = vmatmul.mubr.f32.gmra.mrb[0].mxu0 %v1235
      %v1309 = vpop.f32.mrb[0].mxu0
      %v1310 = vadd.f32 0.0, %v1309
      %v1311 = vpop.f32.mrb[0].mxu0
      %v1312 = vadd.f32 0.0, %v1311
      %1313 = vdwg.mxu0
      %1314 = vmatprep.subr.mxu0 0.0
      %1315 = vmatpush1.msra.mxu0 %v1241
      %1316 = vmatprep.subr.mxu0 0.0
      %1317 = vmatpush1.msra.mxu0 0.0
      %1318 = vmatprep.subr.mxu0 0.0
      %1319 = vmatpush1.msra.mxu0 0.0
      %1320 = vmatprep.subr.mxu0 0.0
      %1321 = vmatpush1.msra.mxu0 0.0
      %1322 = vmatprep.subr.mxu0 0.0
      %1323 = vmatpush1.msra.mxu0 0.0
      %1324 = vmatprep.subr.mxu0 0.0
      %1325 = vmatpush1.msra.mxu0 0.0
      %1326 = vmatprep.subr.mxu0 0.0
      %1327 = vmatpush1.msra.mxu0 0.0
      %1328 = vmatprep.subr.mxu0 0.0
      %1329 = vmatpush1.msra.mxu0 0.0
      %1330 = vmatprep.subr.mxu0 0.0
      %1331 = vmatpush1.msra.mxu0 0.0
      %1332 = vmatprep.subr.mxu0 0.0
      %1333 = vmatpush1.msra.mxu0 0.0
      %1334 = vmatprep.subr.mxu0 0.0
      %1335 = vmatpush1.msra.mxu0 0.0
      %1336 = vmatprep.subr.mxu0 0.0
      %1337 = vmatpush1.msra.mxu0 0.0
      %1338 = vmatprep.subr.mxu0 0.0
      %1339 = vmatpush1.msra.mxu0 0.0
      %1340 = vmatprep.subr.mxu0 0.0
      %1341 = vmatpush1.msra.mxu0 0.0
      %1342 = vmatprep.subr.mxu0 0.0
      %1343 = vmatpush1.msra.mxu0 0.0
      %1344 = vmatprep.subr.mxu0 0.0
      %1345 = vmatpush1.msra.mxu0 0.0
      %1346 = vmatprep.subr.mxu0 0.0
      %1347 = vmatpush1.msra.mxu0 0.0
      %1348 = vmatprep.subr.mxu0 0.0
      %1349 = vmatpush1.msra.mxu0 0.0
      %1350 = vmatprep.subr.mxu0 0.0
      %1351 = vmatpush1.msra.mxu0 0.0
      %1352 = vmatprep.subr.mxu0 0.0
      %1353 = vmatpush1.msra.mxu0 0.0
      %1354 = vmatprep.subr.mxu0 0.0
      %1355 = vmatpush1.msra.mxu0 0.0
      %1356 = vmatprep.subr.mxu0 0.0
      %1357 = vmatpush1.msra.mxu0 0.0
      %1358 = vmatprep.subr.mxu0 0.0
      %1359 = vmatpush1.msra.mxu0 0.0
      %1360 = vmatprep.subr.mxu0 0.0
      %1361 = vmatpush1.msra.mxu0 0.0
      %1362 = vmatprep.subr.mxu0 0.0
      %1363 = vmatpush1.msra.mxu0 0.0
      %1364 = vmatprep.subr.mxu0 0.0
      %1365 = vmatpush1.msra.mxu0 0.0
      %1366 = vmatprep.subr.mxu0 0.0
      %1367 = vmatpush1.msra.mxu0 0.0
      %1368 = vmatprep.subr.mxu0 0.0
      %1369 = vmatpush1.msra.mxu0 0.0
      %1370 = vmatprep.subr.mxu0 0.0
      %1371 = vmatpush1.msra.mxu0 0.0
      %1372 = vmatprep.subr.mxu0 0.0
      %1373 = vmatpush1.msra.mxu0 0.0
      %1374 = vmatprep.subr.mxu0 0.0
      %1375 = vmatpush1.msra.mxu0 0.0
      %1376 = vmatprep.subr.mxu0 0.0
      %1377 = vmatpush1.msra.mxu0 0.0
      %1378 = vmatprep.mubr.f32.mxu0 0.0
      %1379 = vmatmul.mubr.f32.gmra.mrb[0].mxu0 %v1235
      %v1380 = vpop.f32.mrb[0].mxu0
      %v1381 = vadd.f32 0.0, %v1380
      %v1382 = vpop.f32.mrb[0].mxu0
      %1383 = vdwg.mxu0
      %v1384 = vadd.f32 %v1220, %v1310
      %v1385 = vadd.f32 %v1221, %v1312
      %v1386 = vadd.f32 %v1222, %v1381
      %s1387 = scalar_lea.vmem %s1, 56
      %v1388 = vld [vmem:[%s1387] sm:$0xff]
      %1389 = vrot.lane.b32.xlu0 %v248, 91
      %v1390 = vpop.permute.xlu0 %1389
      %1391 = vrot.lane.b32.xlu0 %v255, 91
      %v1392 = vpop.permute.xlu0 %1391
      %1393 = vrot.lane.b32.xlu0 %v249, 91
      %v1394 = vpop.permute.xlu0 %1393
      %vm1395 = vcmask 744448
      %v1396 = vsel %vm1395, %v1390, %v1392
      %v1397 = vsel %vm1395, %v1392, %v1394
      %v1399 = vsel %vm265, %v1388, 0
      %v1401 = vsel %vm269, %v1396, 0
      %v1403 = vsel %vm269, %v1397, 0
      %v1405 = vsel %vm269, %v1394, 0
      %1407 = vmatprep.subr.mxu0 %v1403
      %1408 = vmatpush1.msra.mxu0 %v1401
      %1409 = vmatprep.subr.mxu0 0.0
      %1410 = vmatpush1.msra.mxu0 0.0
      %1411 = vmatprep.subr.mxu0 0.0
      %1412 = vmatpush1.msra.mxu0 0.0
      %1413 = vmatprep.subr.mxu0 0.0
      %1414 = vmatpush1.msra.mxu0 0.0
      %1415 = vmatprep.subr.mxu0 0.0
      %1416 = vmatpush1.msra.mxu0 0.0
      %1417 = vmatprep.subr.mxu0 0.0
      %1418 = vmatpush1.msra.mxu0 0.0
      %1419 = vmatprep.subr.mxu0 0.0
      %1420 = vmatpush1.msra.mxu0 0.0
      %1421 = vmatprep.subr.mxu0 0.0
      %1422 = vmatpush1.msra.mxu0 0.0
      %1423 = vmatprep.subr.mxu0 0.0
      %1424 = vmatpush1.msra.mxu0 0.0
      %1425 = vmatprep.subr.mxu0 0.0
      %1426 = vmatpush1.msra.mxu0 0.0
      %1427 = vmatprep.subr.mxu0 0.0
      %1428 = vmatpush1.msra.mxu0 0.0
      %1429 = vmatprep.subr.mxu0 0.0
      %1430 = vmatpush1.msra.mxu0 0.0
      %1431 = vmatprep.subr.mxu0 0.0
      %1432 = vmatpush1.msra.mxu0 0.0
      %1433 = vmatprep.subr.mxu0 0.0
      %1434 = vmatpush1.msra.mxu0 0.0
      %1435 = vmatprep.subr.mxu0 0.0
      %1436 = vmatpush1.msra.mxu0 0.0
      %1437 = vmatprep.subr.mxu0 0.0
      %1438 = vmatpush1.msra.mxu0 0.0
      %1439 = vmatprep.subr.mxu0 0.0
      %1440 = vmatpush1.msra.mxu0 0.0
      %1441 = vmatprep.subr.mxu0 0.0
      %1442 = vmatpush1.msra.mxu0 0.0
      %1443 = vmatprep.subr.mxu0 0.0
      %1444 = vmatpush1.msra.mxu0 0.0
      %1445 = vmatprep.subr.mxu0 0.0
      %1446 = vmatpush1.msra.mxu0 0.0
      %1447 = vmatprep.subr.mxu0 0.0
      %1448 = vmatpush1.msra.mxu0 0.0
      %1449 = vmatprep.subr.mxu0 0.0
      %1450 = vmatpush1.msra.mxu0 0.0
      %1451 = vmatprep.subr.mxu0 0.0
      %1452 = vmatpush1.msra.mxu0 0.0
      %1453 = vmatprep.subr.mxu0 0.0
      %1454 = vmatpush1.msra.mxu0 0.0
      %1455 = vmatprep.subr.mxu0 0.0
      %1456 = vmatpush1.msra.mxu0 0.0
      %1457 = vmatprep.subr.mxu0 0.0
      %1458 = vmatpush1.msra.mxu0 0.0
      %1459 = vmatprep.subr.mxu0 0.0
      %1460 = vmatpush1.msra.mxu0 0.0
      %1461 = vmatprep.subr.mxu0 0.0
      %1462 = vmatpush1.msra.mxu0 0.0
      %1463 = vmatprep.subr.mxu0 0.0
      %1464 = vmatpush1.msra.mxu0 0.0
      %1465 = vmatprep.subr.mxu0 0.0
      %1466 = vmatpush1.msra.mxu0 0.0
      %1467 = vmatprep.subr.mxu0 0.0
      %1468 = vmatpush1.msra.mxu0 0.0
      %1469 = vmatprep.subr.mxu0 0.0
      %1470 = vmatpush1.msra.mxu0 0.0
      %1471 = vmatprep.mubr.f32.mxu0 0.0
      %1472 = vmatmul.mubr.f32.gmra.mrb[0].mxu0 %v1399
      %v1473 = vpop.f32.mrb[0].mxu0
      %v1474 = vadd.f32 0.0, %v1473
      %v1475 = vpop.f32.mrb[0].mxu0
      %v1476 = vadd.f32 0.0, %v1475
      %1477 = vdwg.mxu0
      %1478 = vmatprep.subr.mxu0 0.0
      %1479 = vmatpush1.msra.mxu0 %v1405
      %1480 = vmatprep.subr.mxu0 0.0
      %1481 = vmatpush1.msra.mxu0 0.0
      %1482 = vmatprep.subr.mxu0 0.0
      %1483 = vmatpush1.msra.mxu0 0.0
      %1484 = vmatprep.subr.mxu0 0.0
      %1485 = vmatpush1.msra.mxu0 0.0
      %1486 = vmatprep.subr.mxu0 0.0
      %1487 = vmatpush1.msra.mxu0 0.0
      %1488 = vmatprep.subr.mxu0 0.0
      %1489 = vmatpush1.msra.mxu0 0.0
      %1490 = vmatprep.subr.mxu0 0.0
      %1491 = vmatpush1.msra.mxu0 0.0
      %1492 = vmatprep.subr.mxu0 0.0
      %1493 = vmatpush1.msra.mxu0 0.0
      %1494 = vmatprep.subr.mxu0 0.0
      %1495 = vmatpush1.msra.mxu0 0.0
      %1496 = vmatprep.subr.mxu0 0.0
      %1497 = vmatpush1.msra.mxu0 0.0
      %1498 = vmatprep.subr.mxu0 0.0
      %1499 = vmatpush1.msra.mxu0 0.0
      %1500 = vmatprep.subr.mxu0 0.0
      %1501 = vmatpush1.msra.mxu0 0.0
      %1502 = vmatprep.subr.mxu0 0.0
      %1503 = vmatpush1.msra.mxu0 0.0
      %1504 = vmatprep.subr.mxu0 0.0
      %1505 = vmatpush1.msra.mxu0 0.0
      %1506 = vmatprep.subr.mxu0 0.0
      %1507 = vmatpush1.msra.mxu0 0.0
      %1508 = vmatprep.subr.mxu0 0.0
      %1509 = vmatpush1.msra.mxu0 0.0
      %1510 = vmatprep.subr.mxu0 0.0
      %1511 = vmatpush1.msra.mxu0 0.0
      %1512 = vmatprep.subr.mxu0 0.0
      %1513 = vmatpush1.msra.mxu0 0.0
      %1514 = vmatprep.subr.mxu0 0.0
      %1515 = vmatpush1.msra.mxu0 0.0
      %1516 = vmatprep.subr.mxu0 0.0
      %1517 = vmatpush1.msra.mxu0 0.0
      %1518 = vmatprep.subr.mxu0 0.0
      %1519 = vmatpush1.msra.mxu0 0.0
      %1520 = vmatprep.subr.mxu0 0.0
      %1521 = vmatpush1.msra.mxu0 0.0
      %1522 = vmatprep.subr.mxu0 0.0
      %1523 = vmatpush1.msra.mxu0 0.0
      %1524 = vmatprep.subr.mxu0 0.0
      %1525 = vmatpush1.msra.mxu0 0.0
      %1526 = vmatprep.subr.mxu0 0.0
      %1527 = vmatpush1.msra.mxu0 0.0
      %1528 = vmatprep.subr.mxu0 0.0
      %1529 = vmatpush1.msra.mxu0 0.0
      %1530 = vmatprep.subr.mxu0 0.0
      %1531 = vmatpush1.msra.mxu0 0.0
      %1532 = vmatprep.subr.mxu0 0.0
      %1533 = vmatpush1.msra.mxu0 0.0
      %1534 = vmatprep.subr.mxu0 0.0
      %1535 = vmatpush1.msra.mxu0 0.0
      %1536 = vmatprep.subr.mxu0 0.0
      %1537 = vmatpush1.msra.mxu0 0.0
      %1538 = vmatprep.subr.mxu0 0.0
      %1539 = vmatpush1.msra.mxu0 0.0
      %1540 = vmatprep.subr.mxu0 0.0
      %1541 = vmatpush1.msra.mxu0 0.0
      %1542 = vmatprep.mubr.f32.mxu0 0.0
      %1543 = vmatmul.mubr.f32.gmra.mrb[0].mxu0 %v1399
      %v1544 = vpop.f32.mrb[0].mxu0
      %v1545 = vadd.f32 0.0, %v1544
      %v1546 = vpop.f32.mrb[0].mxu0
      %1547 = vdwg.mxu0
      %v1548 = vadd.f32 %v1384, %v1474
      %v1549 = vadd.f32 %v1385, %v1476
      %v1550 = vadd.f32 %v1386, %v1545
      %s1551 = scalar_lea.vmem %s1, 64
      %v1552 = vld [vmem:[%s1551] sm:$0xff]
      %1553 = vrot.lane.b32.xlu0 %v248, 90
      %v1554 = vpop.permute.xlu0 %1553
      %1555 = vrot.lane.b32.xlu0 %v255, 90
      %v1556 = vpop.permute.xlu0 %1555
      %1557 = vrot.lane.b32.xlu0 %v249, 90
      %v1558 = vpop.permute.xlu0 %1557
      %vm1559 = vcmask 736256
      %v1560 = vsel %vm1559, %v1554, %v1556
      %v1561 = vsel %vm1559, %v1556, %v1558
      %v1563 = vsel %vm265, %v1552, 0
      %v1565 = vsel %vm269, %v1560, 0
      %v1567 = vsel %vm269, %v1561, 0
      %v1569 = vsel %vm269, %v1558, 0
      %1571 = vmatprep.subr.mxu0 %v1567
      %1572 = vmatpush1.msra.mxu0 %v1565
      %1573 = vmatprep.subr.mxu0 0.0
      %1574 = vmatpush1.msra.mxu0 0.0
      %1575 = vmatprep.subr.mxu0 0.0
      %1576 = vmatpush1.msra.mxu0 0.0
      %1577 = vmatprep.subr.mxu0 0.0
      %1578 = vmatpush1.msra.mxu0 0.0
      %1579 = vmatprep.subr.mxu0 0.0
      %1580 = vmatpush1.msra.mxu0 0.0
      %1581 = vmatprep.subr.mxu0 0.0
      %1582 = vmatpush1.msra.mxu0 0.0
      %1583 = vmatprep.subr.mxu0 0.0
      %1584 = vmatpush1.msra.mxu0 0.0
      %1585 = vmatprep.subr.mxu0 0.0
      %1586 = vmatpush1.msra.mxu0 0.0
      %1587 = vmatprep.subr.mxu0 0.0
      %1588 = vmatpush1.msra.mxu0 0.0
      %1589 = vmatprep.subr.mxu0 0.0
      %1590 = vmatpush1.msra.mxu0 0.0
      %1591 = vmatprep.subr.mxu0 0.0
      %1592 = vmatpush1.msra.mxu0 0.0
      %1593 = vmatprep.subr.mxu0 0.0
      %1594 = vmatpush1.msra.mxu0 0.0
      %1595 = vmatprep.subr.mxu0 0.0
      %1596 = vmatpush1.msra.mxu0 0.0
      %1597 = vmatprep.subr.mxu0 0.0
      %1598 = vmatpush1.msra.mxu0 0.0
      %1599 = vmatprep.subr.mxu0 0.0
      %1600 = vmatpush1.msra.mxu0 0.0
      %1601 = vmatprep.subr.mxu0 0.0
      %1602 = vmatpush1.msra.mxu0 0.0
      %1603 = vmatprep.subr.mxu0 0.0
      %1604 = vmatpush1.msra.mxu0 0.0
      %1605 = vmatprep.subr.mxu0 0.0
      %1606 = vmatpush1.msra.mxu0 0.0
      %1607 = vmatprep.subr.mxu0 0.0
      %1608 = vmatpush1.msra.mxu0 0.0
      %1609 = vmatprep.subr.mxu0 0.0
      %1610 = vmatpush1.msra.mxu0 0.0
      %1611 = vmatprep.subr.mxu0 0.0
      %1612 = vmatpush1.msra.mxu0 0.0
      %1613 = vmatprep.subr.mxu0 0.0
      %1614 = vmatpush1.msra.mxu0 0.0
      %1615 = vmatprep.subr.mxu0 0.0
      %1616 = vmatpush1.msra.mxu0 0.0
      %1617 = vmatprep.subr.mxu0 0.0
      %1618 = vmatpush1.msra.mxu0 0.0
      %1619 = vmatprep.subr.mxu0 0.0
      %1620 = vmatpush1.msra.mxu0 0.0
      %1621 = vmatprep.subr.mxu0 0.0
      %1622 = vmatpush1.msra.mxu0 0.0
      %1623 = vmatprep.subr.mxu0 0.0
      %1624 = vmatpush1.msra.mxu0 0.0
      %1625 = vmatprep.subr.mxu0 0.0
      %1626 = vmatpush1.msra.mxu0 0.0
      %1627 = vmatprep.subr.mxu0 0.0
      %1628 = vmatpush1.msra.mxu0 0.0
      %1629 = vmatprep.subr.mxu0 0.0
      %1630 = vmatpush1.msra.mxu0 0.0
      %1631 = vmatprep.subr.mxu0 0.0
      %1632 = vmatpush1.msra.mxu0 0.0
      %1633 = vmatprep.subr.mxu0 0.0
      %1634 = vmatpush1.msra.mxu0 0.0
      %1635 = vmatprep.mubr.f32.mxu0 0.0
      %1636 = vmatmul.mubr.f32.gmra.mrb[0].mxu0 %v1563
      %v1637 = vpop.f32.mrb[0].mxu0
      %v1638 = vadd.f32 0.0, %v1637
      %v1639 = vpop.f32.mrb[0].mxu0
      %v1640 = vadd.f32 0.0, %v1639
      %1641 = vdwg.mxu0
      %1642 = vmatprep.subr.mxu0 0.0
      %1643 = vmatpush1.msra.mxu0 %v1569
      %1644 = vmatprep.subr.mxu0 0.0
      %1645 = vmatpush1.msra.mxu0 0.0
      %1646 = vmatprep.subr.mxu0 0.0
      %1647 = vmatpush1.msra.mxu0 0.0
      %1648 = vmatprep.subr.mxu0 0.0
      %1649 = vmatpush1.msra.mxu0 0.0
      %1650 = vmatprep.subr.mxu0 0.0
      %1651 = vmatpush1.msra.mxu0 0.0
      %1652 = vmatprep.subr.mxu0 0.0
      %1653 = vmatpush1.msra.mxu0 0.0
      %1654 = vmatprep.subr.mxu0 0.0
      %1655 = vmatpush1.msra.mxu0 0.0
      %1656 = vmatprep.subr.mxu0 0.0
      %1657 = vmatpush1.msra.mxu0 0.0
      %1658 = vmatprep.subr.mxu0 0.0
      %1659 = vmatpush1.msra.mxu0 0.0
      %1660 = vmatprep.subr.mxu0 0.0
      %1661 = vmatpush1.msra.mxu0 0.0
      %1662 = vmatprep.subr.mxu0 0.0
      %1663 = vmatpush1.msra.mxu0 0.0
      %1664 = vmatprep.subr.mxu0 0.0
      %1665 = vmatpush1.msra.mxu0 0.0
      %1666 = vmatprep.subr.mxu0 0.0
      %1667 = vmatpush1.msra.mxu0 0.0
      %1668 = vmatprep.subr.mxu0 0.0
      %1669 = vmatpush1.msra.mxu0 0.0
      %1670 = vmatprep.subr.mxu0 0.0
      %1671 = vmatpush1.msra.mxu0 0.0
      %1672 = vmatprep.subr.mxu0 0.0
      %1673 = vmatpush1.msra.mxu0 0.0
      %1674 = vmatprep.subr.mxu0 0.0
      %1675 = vmatpush1.msra.mxu0 0.0
      %1676 = vmatprep.subr.mxu0 0.0
      %1677 = vmatpush1.msra.mxu0 0.0
      %1678 = vmatprep.subr.mxu0 0.0
      %1679 = vmatpush1.msra.mxu0 0.0
      %1680 = vmatprep.subr.mxu0 0.0
      %1681 = vmatpush1.msra.mxu0 0.0
      %1682 = vmatprep.subr.mxu0 0.0
      %1683 = vmatpush1.msra.mxu0 0.0
      %1684 = vmatprep.subr.mxu0 0.0
      %1685 = vmatpush1.msra.mxu0 0.0
      %1686 = vmatprep.subr.mxu0 0.0
      %1687 = vmatpush1.msra.mxu0 0.0
      %1688 = vmatprep.subr.mxu0 0.0
      %1689 = vmatpush1.msra.mxu0 0.0
      %1690 = vmatprep.subr.mxu0 0.0
      %1691 = vmatpush1.msra.mxu0 0.0
      %1692 = vmatprep.subr.mxu0 0.0
      %1693 = vmatpush1.msra.mxu0 0.0
      %1694 = vmatprep.subr.mxu0 0.0
      %1695 = vmatpush1.msra.mxu0 0.0
      %1696 = vmatprep.subr.mxu0 0.0
      %1697 = vmatpush1.msra.mxu0 0.0
      %1698 = vmatprep.subr.mxu0 0.0
      %1699 = vmatpush1.msra.mxu0 0.0
      %1700 = vmatprep.subr.mxu0 0.0
      %1701 = vmatpush1.msra.mxu0 0.0
      %1702 = vmatprep.subr.mxu0 0.0
      %1703 = vmatpush1.msra.mxu0 0.0
      %1704 = vmatprep.subr.mxu0 0.0
      %1705 = vmatpush1.msra.mxu0 0.0
      %1706 = vmatprep.mubr.f32.mxu0 0.0
      %1707 = vmatmul.mubr.f32.gmra.mrb[0].mxu0 %v1563
      %v1708 = vpop.f32.mrb[0].mxu0
      %v1709 = vadd.f32 0.0, %v1708
      %v1710 = vpop.f32.mrb[0].mxu0
      %1711 = vdwg.mxu0
      %v1712 = vadd.f32 %v1548, %v1638
      %v1713 = vadd.f32 %v1549, %v1640
      %v1714 = vadd.f32 %v1550, %v1709
      %v1715 = vld [vmem:[%s2] sm:$0xff]
      %1717 = vset.pattern.permute.xlu0 0
      %1718 = vperm.xlu0 %1717, %v1715
      %v1719 = vpop.permute.xlu0 %1718
      %v1721 = vadd.f32 %v1712, %v1719
      %v1722 = vadd.f32 %v1713, %v1719
      %v1723 = vadd.f32 %v1714, %v1719
      %v1724 = vmax.f32 %v1721, 0.0
      %v1725 = vmax.f32 %v1722, 0.0
      %v1726 = vmax.f32 %v1723, 0.0
      %v1727 = vld [vmem:[%s3] sm:$0x7]
      %v1729 = vlaneseq
      %v1730 = vshrl.u32 %v1729, 7
      %v1731 = vsub.s32 0, %v1730
      %v1732 = vrot.slane %v1727, %v1731
      %v1733 = vlaneseq
      %v1734 = vshrl.u32 %v1733, 7
      %v1735 = vsub.s32 1, %v1734
      %v1736 = vrot.slane %v1727, %v1735
      %v1737 = vlaneseq
      %v1738 = vshrl.u32 %v1737, 7
      %v1739 = vsub.s32 2, %v1738
      %v1740 = vrot.slane %v1727, %v1739
      %vm1743 = vcmask 556032
      %v1744 = vsel %vm1743, %v1740, 0
      %v1747 = vsel %vm1743, %v1726, 0
      %1749 = vmatprep.subr.mxu0 %v1725
      %1750 = vmatpush1.xpose.msra.mxu0 %v1724
      %1751 = vmatprep.subr.mxu0 0.0
      %1752 = vmatpush1.xpose.msra.mxu0 0.0
      %1753 = vmatprep.subr.mxu0 0.0
      %1754 = vmatpush1.xpose.msra.mxu0 0.0
      %1755 = vmatprep.subr.mxu0 0.0
      %1756 = vmatpush1.xpose.msra.mxu0 0.0
      %1757 = vmatprep.subr.mxu0 0.0
      %1758 = vmatpush1.xpose.msra.mxu0 0.0
      %1759 = vmatprep.subr.mxu0 0.0
      %1760 = vmatpush1.xpose.msra.mxu0 0.0
      %1761 = vmatprep.subr.mxu0 0.0
      %1762 = vmatpush1.xpose.msra.mxu0 0.0
      %1763 = vmatprep.subr.mxu0 0.0
      %1764 = vmatpush1.xpose.msra.mxu0 0.0
      %1765 = vmatprep.subr.mxu0 0.0
      %1766 = vmatpush1.xpose.msra.mxu0 0.0
      %1767 = vmatprep.subr.mxu0 0.0
      %1768 = vmatpush1.xpose.msra.mxu0 0.0
      %1769 = vmatprep.subr.mxu0 0.0
      %1770 = vmatpush1.xpose.msra.mxu0 0.0
      %1771 = vmatprep.subr.mxu0 0.0
      %1772 = vmatpush1.xpose.msra.mxu0 0.0
      %1773 = vmatprep.subr.mxu0 0.0
      %1774 = vmatpush1.xpose.msra.mxu0 0.0
      %1775 = vmatprep.subr.mxu0 0.0
      %1776 = vmatpush1.xpose.msra.mxu0 0.0
      %1777 = vmatprep.subr.mxu0 0.0
      %1778 = vmatpush1.xpose.msra.mxu0 0.0
      %1779 = vmatprep.subr.mxu0 0.0
      %1780 = vmatpush1.xpose.msra.mxu0 0.0
      %1781 = vmatprep.subr.mxu0 0.0
      %1782 = vmatpush1.xpose.msra.mxu0 0.0
      %1783 = vmatprep.subr.mxu0 0.0
      %1784 = vmatpush1.xpose.msra.mxu0 0.0
      %1785 = vmatprep.subr.mxu0 0.0
      %1786 = vmatpush1.xpose.msra.mxu0 0.0
      %1787 = vmatprep.subr.mxu0 0.0
      %1788 = vmatpush1.xpose.msra.mxu0 0.0
      %1789 = vmatprep.subr.mxu0 0.0
      %1790 = vmatpush1.xpose.msra.mxu0 0.0
      %1791 = vmatprep.subr.mxu0 0.0
      %1792 = vmatpush1.xpose.msra.mxu0 0.0
      %1793 = vmatprep.subr.mxu0 0.0
      %1794 = vmatpush1.xpose.msra.mxu0 0.0
      %1795 = vmatprep.subr.mxu0 0.0
      %1796 = vmatpush1.xpose.msra.mxu0 0.0
      %1797 = vmatprep.subr.mxu0 0.0
      %1798 = vmatpush1.xpose.msra.mxu0 0.0
      %1799 = vmatprep.subr.mxu0 0.0
      %1800 = vmatpush1.xpose.msra.mxu0 0.0
      %1801 = vmatprep.subr.mxu0 0.0
      %1802 = vmatpush1.xpose.msra.mxu0 0.0
      %1803 = vmatprep.subr.mxu0 0.0
      %1804 = vmatpush1.xpose.msra.mxu0 0.0
      %1805 = vmatprep.subr.mxu0 0.0
      %1806 = vmatpush1.xpose.msra.mxu0 0.0
      %1807 = vmatprep.subr.mxu0 0.0
      %1808 = vmatpush1.xpose.msra.mxu0 0.0
      %1809 = vmatprep.subr.mxu0 0.0
      %1810 = vmatpush1.xpose.msra.mxu0 0.0
      %1811 = vmatprep.subr.mxu0 0.0
      %1812 = vmatpush1.xpose.msra.mxu0 0.0
      %1813 = vmatprep.mubr.f32.mxu0 %v1736
      %1814 = vmatmul.mubr.f32.gmra.mrb[0].mxu0 %v1732
      %v1815 = vpop.f32.mrb[0].mxu0
      %v1816 = vadd.f32 0.0, %v1815
      %v1817 = vpop.f32.mrb[0].mxu0
      %1818 = vdwg.mxu0
      %1819 = vmatprep.subr.mxu0 0.0
      %1820 = vmatpush1.xpose.msra.mxu0 %v1747
      %1821 = vmatprep.subr.mxu0 0.0
      %1822 = vmatpush1.xpose.msra.mxu0 0.0
      %1823 = vmatprep.subr.mxu0 0.0
      %1824 = vmatpush1.xpose.msra.mxu0 0.0
      %1825 = vmatprep.subr.mxu0 0.0
      %1826 = vmatpush1.xpose.msra.mxu0 0.0
      %1827 = vmatprep.subr.mxu0 0.0
      %1828 = vmatpush1.xpose.msra.mxu0 0.0
      %1829 = vmatprep.subr.mxu0 0.0
      %1830 = vmatpush1.xpose.msra.mxu0 0.0
      %1831 = vmatprep.subr.mxu0 0.0
      %1832 = vmatpush1.xpose.msra.mxu0 0.0
      %1833 = vmatprep.subr.mxu0 0.0
      %1834 = vmatpush1.xpose.msra.mxu0 0.0
      %1835 = vmatprep.subr.mxu0 0.0
      %1836 = vmatpush1.xpose.msra.mxu0 0.0
      %1837 = vmatprep.subr.mxu0 0.0
      %1838 = vmatpush1.xpose.msra.mxu0 0.0
      %1839 = vmatprep.subr.mxu0 0.0
      %1840 = vmatpush1.xpose.msra.mxu0 0.0
      %1841 = vmatprep.subr.mxu0 0.0
      %1842 = vmatpush1.xpose.msra.mxu0 0.0
      %1843 = vmatprep.subr.mxu0 0.0
      %1844 = vmatpush1.xpose.msra.mxu0 0.0
      %1845 = vmatprep.subr.mxu0 0.0
      %1846 = vmatpush1.xpose.msra.mxu0 0.0
      %1847 = vmatprep.subr.mxu0 0.0
      %1848 = vmatpush1.xpose.msra.mxu0 0.0
      %1849 = vmatprep.subr.mxu0 0.0
      %1850 = vmatpush1.xpose.msra.mxu0 0.0
      %1851 = vmatprep.subr.mxu0 0.0
      %1852 = vmatpush1.xpose.msra.mxu0 0.0
      %1853 = vmatprep.subr.mxu0 0.0
      %1854 = vmatpush1.xpose.msra.mxu0 0.0
      %1855 = vmatprep.subr.mxu0 0.0
      %1856 = vmatpush1.xpose.msra.mxu0 0.0
      %1857 = vmatprep.subr.mxu0 0.0
      %1858 = vmatpush1.xpose.msra.mxu0 0.0
      %1859 = vmatprep.subr.mxu0 0.0
      %1860 = vmatpush1.xpose.msra.mxu0 0.0
      %1861 = vmatprep.subr.mxu0 0.0
      %1862 = vmatpush1.xpose.msra.mxu0 0.0
      %1863 = vmatprep.subr.mxu0 0.0
      %1864 = vmatpush1.xpose.msra.mxu0 0.0
      %1865 = vmatprep.subr.mxu0 0.0
      %1866 = vmatpush1.xpose.msra.mxu0 0.0
      %1867 = vmatprep.subr.mxu0 0.0
      %1868 = vmatpush1.xpose.msra.mxu0 0.0
      %1869 = vmatprep.subr.mxu0 0.0
      %1870 = vmatpush1.xpose.msra.mxu0 0.0
      %1871 = vmatprep.subr.mxu0 0.0
      %1872 = vmatpush1.xpose.msra.mxu0 0.0
      %1873 = vmatprep.subr.mxu0 0.0
      %1874 = vmatpush1.xpose.msra.mxu0 0.0
      %1875 = vmatprep.subr.mxu0 0.0
      %1876 = vmatpush1.xpose.msra.mxu0 0.0
      %1877 = vmatprep.subr.mxu0 0.0
      %1878 = vmatpush1.xpose.msra.mxu0 0.0
      %1879 = vmatprep.subr.mxu0 0.0
      %1880 = vmatpush1.xpose.msra.mxu0 0.0
      %1881 = vmatprep.subr.mxu0 0.0
      %1882 = vmatpush1.xpose.msra.mxu0 0.0
      %1883 = vmatprep.mubr.f32.mxu0 0.0
      %1884 = vmatmul.mubr.f32.gmra.mrb[0].mxu0 %v1744
      %v1885 = vpop.f32.mrb[0].mxu0
      %v1886 = vadd.f32 %v1816, %v1885
      %v1887 = vpop.f32.mrb[0].mxu0
      %1888 = vdwg.mxu0
      %v1889 = vld [vmem:[%s4] sm:$0xff]
      %v1890 = vld [vmem:[%s5] sm:$0x1]
      %vm1891 = vcmask 64512
      %v1893 = vsel %vm1891, %v1886, 0
      %1895 = vmatprep.subr.mxu0 0.0
      %1896 = vmatpush1.msra.mxu0 %v1889
      %1897 = vmatprep.subr.mxu0 0.0
      %1898 = vmatpush1.msra.mxu0 0.0
      %1899 = vmatprep.subr.mxu0 0.0
      %1900 = vmatpush1.msra.mxu0 0.0
      %1901 = vmatprep.subr.mxu0 0.0
      %1902 = vmatpush1.msra.mxu0 0.0
      %1903 = vmatprep.subr.mxu0 0.0
      %1904 = vmatpush1.msra.mxu0 0.0
      %1905 = vmatprep.subr.mxu0 0.0
      %1906 = vmatpush1.msra.mxu0 0.0
      %1907 = vmatprep.subr.mxu0 0.0
      %1908 = vmatpush1.msra.mxu0 0.0
      %1909 = vmatprep.subr.mxu0 0.0
      %1910 = vmatpush1.msra.mxu0 0.0
      %1911 = vmatprep.subr.mxu0 0.0
      %1912 = vmatpush1.msra.mxu0 0.0
      %1913 = vmatprep.subr.mxu0 0.0
      %1914 = vmatpush1.msra.mxu0 0.0
      %1915 = vmatprep.subr.mxu0 0.0
      %1916 = vmatpush1.msra.mxu0 0.0
      %1917 = vmatprep.subr.mxu0 0.0
      %1918 = vmatpush1.msra.mxu0 0.0
      %1919 = vmatprep.subr.mxu0 0.0
      %1920 = vmatpush1.msra.mxu0 0.0
      %1921 = vmatprep.subr.mxu0 0.0
      %1922 = vmatpush1.msra.mxu0 0.0
      %1923 = vmatprep.subr.mxu0 0.0
      %1924 = vmatpush1.msra.mxu0 0.0
      %1925 = vmatprep.subr.mxu0 0.0
      %1926 = vmatpush1.msra.mxu0 0.0
      %1927 = vmatprep.subr.mxu0 0.0
      %1928 = vmatpush1.msra.mxu0 0.0
      %1929 = vmatprep.subr.mxu0 0.0
      %1930 = vmatpush1.msra.mxu0 0.0
      %1931 = vmatprep.subr.mxu0 0.0
      %1932 = vmatpush1.msra.mxu0 0.0
      %1933 = vmatprep.subr.mxu0 0.0
      %1934 = vmatpush1.msra.mxu0 0.0
      %1935 = vmatprep.subr.mxu0 0.0
      %1936 = vmatpush1.msra.mxu0 0.0
      %1937 = vmatprep.subr.mxu0 0.0
      %1938 = vmatpush1.msra.mxu0 0.0
      %1939 = vmatprep.subr.mxu0 0.0
      %1940 = vmatpush1.msra.mxu0 0.0
      %1941 = vmatprep.subr.mxu0 0.0
      %1942 = vmatpush1.msra.mxu0 0.0
      %1943 = vmatprep.subr.mxu0 0.0
      %1944 = vmatpush1.msra.mxu0 0.0
      %1945 = vmatprep.subr.mxu0 0.0
      %1946 = vmatpush1.msra.mxu0 0.0
      %1947 = vmatprep.subr.mxu0 0.0
      %1948 = vmatpush1.msra.mxu0 0.0
      %1949 = vmatprep.subr.mxu0 0.0
      %1950 = vmatpush1.msra.mxu0 0.0
      %1951 = vmatprep.subr.mxu0 0.0
      %1952 = vmatpush1.msra.mxu0 0.0
      %1953 = vmatprep.subr.mxu0 0.0
      %1954 = vmatpush1.msra.mxu0 0.0
      %1955 = vmatprep.subr.mxu0 0.0
      %1956 = vmatpush1.msra.mxu0 0.0
      %1957 = vmatprep.subr.mxu0 0.0
      %1958 = vmatpush1.msra.mxu0 0.0
      %1959 = vmatprep.mubr.f32.mxu0 0.0
      %1960 = vmatmul.mubr.f32.gmra.mrb[0].mxu0 %v1893
      %v1961 = vpop.f32.mrb[0].mxu0
      %v1962 = vadd.f32 %v1890, %v1961
      %v1963 = vpop.f32.mrb[0].mxu0
      %1964 = vdwg.mxu0
      %vm1965 = vcmask 73728
      %v1966 = vsel %vm1965, %v1962, -inf
      %1967 = vmax.xlane.f32.xlu0 %v1966
      %v1968 = vpop.xlane.xlu0 %1967
      %v1969 = vmax.f32 %v1968, 0.0
      %v1970 = vsub.f32 %v1962, %v1969
      %v1971 = vmul.f32 %v1970, 1.442695
      %v1972 = vpow.pop %v1971
      %v1973 = vsub.f32 0.0, %v1969
      %v1974 = vmul.f32 %v1973, 1.442695
      %v1975 = vpow.pop %v1974
      %v1976 = vsel %vm1965, %v1972, 0.0
      %1977 = vadd.xlane.f32.xlu0 %v1976
      %v1978 = vpop.xlane.xlu0 %1977
      %v1979 = vmul.f32 %v1975, 10.0
      %v1980 = vadd.f32 %v1978, %v1979
      %v1981 = vrcp.pop %v1980
      %v1982 = vadd.f32 %v1972, %v1975
      %v1983 = vmul.f32 %v1982, %v1981
      %v1984 = vmul.f32 %v1979, %v1981
      %1986 = vrot.lane.b32.xlu0 %v1983, 10
      %v1987 = vpop.permute.xlu0 %1986
      %vm1989 = vcmask 80896
      %v1990 = vsel %vm1989, %v1962, %v1987
      %vm1991 = vcmask 162816
      %v1992 = vsel %vm1991, %v1990, %v1984
      %vm1993 = vcmask 171008
      %v1994 = vsel %vm1993, %v1992, 0.0
      %1995 = vst [vmem:[%s247] sm:$0x1] %v1994
      %p1996 = scmp.lt.s32.totalorder %s17, 1
      %s1997 = scalar_select %p1996, %s17, 1
      %s1998 = scalar_lea.vmem %s6, %s1997
      // Predicated region
      $region45: #{xedl_forward.1} parent=43 // pred_check
        %p1999 = pneg %p166
      $region46: #{xedl_forward.1} parent=43 // pred_check_branch
        %2001 = sbr.rel (%p1999) target = $region48
      $region47: #{xedl_forward.1} parent=43 // pred_region
        _
      $region48: #{xedl_forward.1} parent=43 // pred_fallthru
        _
    $region44: #{xedl_forward.1} parent=5 // pred_fallthru
      _
    %p2002 = scmp.le.s32.totalorder 2, %s12
    // Predicated region
    $region49: #{xedl_forward.1} parent=5 // pred_check
      %p2003 = pneg %p2002
    $region50: #{xedl_forward.1} parent=5 // pred_check_branch
      %2005 = sbr.rel (%p2003) target = $region52
    $region51: #{xedl_forward.1} parent=5 // pred_region
      %s2006 = ssub.s32 %s12, 2
      // Predicated region
      $region53: #{xedl_forward.1} parent=51 // pred_check
        %p2007 = pneg %p172
      $region54: #{xedl_forward.1} parent=51 // pred_check_branch
        %2009 = sbr.rel (%p2007) target = $region56
      $region55: #{xedl_forward.1} parent=51 // pred_region
        %p2010 = scmp.lt.s32.totalorder %s18, 1
        %s2011 = scalar_select %p2010, %s18, 1
        %s2012 = scalar_lea.vmem %s6, %s2011
      $region56: #{xedl_forward.1} parent=51 // pred_fallthru
        _
    $region52: #{xedl_forward.1} parent=5 // pred_fallthru
      _
  $region6: #{xedl_forward.1} parent=0 // loop_footer
    %s16 = sadd.s32 1, %s12
  $region7: #{xedl_forward.1} parent=0 // loop_footer_branch
    %11 = sbr.rel target = $region3
  $region8: #{xedl_forward.1} parent=0 // loop_exit
    _

</llo_original>
